<compile_context>
chip_gen: v6e
topology: v6e:2x2x1
jax: 0.10.0
libtpu: 0.0.40
codegen_flags: <defaults>
</compile_context>

<pallas_src>
import functools

import jax
import jax.numpy as jnp
from jax import lax
from jax.experimental import pallas as pl
from jax.experimental.pallas import tpu as pltpu


def _qvalue_kernel(x_ref, a_ref, w1x_ref, w1a_ref, b1_ref, w2_ref, b2_ref,
                   w3p_ref, b3_ref, out_ref):
    """Fused 3-layer MLP for one batch tile; emits a lane-dense (1, TB) row."""
    # fc1 over the (virtually) concatenated input: dot(x,W1x) + dot(a,W1a).
    h1 = jnp.dot(x_ref[...], w1x_ref[...], preferred_element_type=jnp.float32)
    h1 = h1 + jnp.dot(a_ref[...], w1a_ref[...],
                      preferred_element_type=jnp.float32)
    h1 = jnp.maximum(h1 + b1_ref[...], 0.0)                       # (TB, H)

    # fc2
    h2 = jnp.dot(h1, w2_ref[...], preferred_element_type=jnp.float32)
    h2 = jnp.maximum(h2 + b2_ref[...], 0.0)                       # (TB, H)

    # fc_out with the batch on the lane axis: (8, H) x (TB, H)^T -> (8, TB).
    # Row 0 of w3p holds fc_out.weight, rows 1..7 are zero, so the sublane sum
    # equals row 0 and lands directly as a lane-dense (1, TB) row.
    q8 = lax.dot_general(w3p_ref[...], h2,
                         dimension_numbers=(((1,), (1,)), ((), ())),
                         preferred_element_type=jnp.float32)      # (8, TB)
    q = jnp.sum(q8, axis=0, keepdims=True) + b3_ref[...]          # (1, TB)
    out_ref[...] = q.astype(out_ref.dtype)


@functools.partial(jax.jit, static_argnames=("batch_tile",))
def qvalue_net_continuous(x, a, params, *, batch_tile=256):
    """Pallas forward of QValueNetContinuous.

    x: (B, state_dim) f32, a: (B, action_dim) f32 -> (B, 1) f32.
    """
    w1, b1, w2, b2, w3, b3 = params
    B, state_dim = x.shape
    action_dim = a.shape[1]
    hidden = w1.shape[1]

    # Pad the batch to a tile multiple; padded rows are discarded at the end.
    n_tiles = pl.cdiv(B, batch_tile)
    B_pad = n_tiles * batch_tile
    if B_pad != B:
        x = jnp.pad(x, ((0, B_pad - B), (0, 0)))
        a = jnp.pad(a, ((0, B_pad - B), (0, 0)))

    # Weight prep (tiny, one-time under jit): split W1 for the fused concat,
    # pad fc_out's weight into row 0 of an (8, H) tile, make biases 2-D rows.
    w1x = w1[:state_dim]                                  # (state_dim, H)
    w1a = w1[state_dim:]                                  # (action_dim, H)
    b1r = b1.reshape(1, hidden)
    b2r = b2.reshape(1, hidden)
    w3p = jnp.zeros((8, hidden), w3.dtype).at[0].set(w3[:, 0])
    b3r = b3.reshape(1, 1)

    out = pl.pallas_call(
        _qvalue_kernel,
        out_shape=jax.ShapeDtypeStruct((1, B_pad), jnp.float32),
        grid_spec=pltpu.PrefetchScalarGridSpec(
            num_scalar_prefetch=0,
            grid=(n_tiles,),
            in_specs=[
                pl.BlockSpec((batch_tile, state_dim), lambda i: (i, 0)),  # x
                pl.BlockSpec((batch_tile, action_dim), lambda i: (i, 0)),  # a
                pl.BlockSpec((state_dim, hidden), lambda i: (0, 0)),   # W1_x
                pl.BlockSpec((action_dim, hidden), lambda i: (0, 0)),  # W1_a
                pl.BlockSpec((1, hidden), lambda i: (0, 0)),           # b1
                pl.BlockSpec((hidden, hidden), lambda i: (0, 0)),      # W2
                pl.BlockSpec((1, hidden), lambda i: (0, 0)),           # b2
                pl.BlockSpec((8, hidden), lambda i: (0, 0)),           # W3 pad
                pl.BlockSpec((1, 1), lambda i: (0, 0)),                # b3
            ],
            out_specs=pl.BlockSpec((1, batch_tile), lambda i: (0, i)),
        ),
        compiler_params=pltpu.CompilerParams(
            dimension_semantics=("parallel",)),
    )(x, a, w1x, w1a, b1r, w2, b2r, w3p, b3r)

    return out[0, :B][:, None]                             # (B, 1)


def init_params(key, state_dim, hidden_dim, action_dim):
    """Deterministic init mirroring torch.nn.Linear's U(-1/sqrt(fan_in), ...)."""
    d_in = state_dim + action_dim
    ks = jax.random.split(key, 6)

    def uniform(k, shape, fan_in):
        bound = 1.0 / jnp.sqrt(fan_in)
        return jax.random.uniform(k, shape, jnp.float32, -bound, bound)

    w1 = uniform(ks[0], (d_in, hidden_dim), d_in)        # fc1.weight.T
    b1 = uniform(ks[1], (hidden_dim,), d_in)
    w2 = uniform(ks[2], (hidden_dim, hidden_dim), hidden_dim)
    b2 = uniform(ks[3], (hidden_dim,), hidden_dim)
    w3 = uniform(ks[4], (hidden_dim, 1), hidden_dim)     # fc_out.weight.T
    b3 = uniform(ks[5], (1,), hidden_dim)
    return (w1, b1, w2, b2, w3, b3)


def reference_forward(x, a, params):
    """Pure-JAX reference for correctness checking."""
    w1, b1, w2, b2, w3, b3 = params
    cat = jnp.concatenate([x, a], axis=1)
    h1 = jnp.maximum(cat @ w1 + b1, 0.0)
    h2 = jnp.maximum(h1 @ w2 + b2, 0.0)
    return h2 @ w3 + b3


if __name__ == "__main__":
    state_dim, hidden_dim, action_dim = 16, 32, 8
    batch = 500          # not a tile multiple on purpose -> exercises padding

    key = jax.random.PRNGKey(0)
    k_x, k_a, k_p = jax.random.split(key, 3)
    x = jax.random.normal(k_x, (batch, state_dim), jnp.float32)
    a = jax.random.normal(k_a, (batch, action_dim), jnp.float32)
    params = init_params(k_p, state_dim, hidden_dim, action_dim)

    q = qvalue_net_continuous(x, a, params, batch_tile=256)
    q = jax.block_until_ready(q)

    q_ref = reference_forward(x, a, params)
    assert q.shape == (batch, 1), q.shape
    assert jnp.allclose(q, q_ref, atol=1e-4, rtol=1e-4), "mismatch vs reference"
    print("KERNEL_OK")
</pallas_src>

<mosaic_0001>
module attributes {stable_mosaic.version = 11 : i64} {
  func.func @_qvalue_kernel(%arg0: i32, %arg1: memref<256x16xf32, #tpu.memory_space<vmem>>, %arg2: memref<256x8xf32, #tpu.memory_space<vmem>>, %arg3: memref<16x32xf32, #tpu.memory_space<vmem>>, %arg4: memref<8x32xf32, #tpu.memory_space<vmem>>, %arg5: memref<1x32xf32, #tpu.memory_space<vmem>>, %arg6: memref<32x32xf32, #tpu.memory_space<vmem>>, %arg7: memref<1x32xf32, #tpu.memory_space<vmem>>, %arg8: memref<8x32xf32, #tpu.memory_space<vmem>>, %arg9: memref<1x1xf32, #tpu.memory_space<vmem>>, %arg10: memref<1x256xf32, #tpu.memory_space<vmem>>) attributes {dimension_semantics = [#tpu.dimension_semantics<parallel>], iteration_bounds = array<i64: 2>, scalar_prefetch = 0 : i64, scratch_operands = 0 : i64, tpu.core_type = #tpu.core_type<tc>, window_params = [{transform_indices = @transform_0, window_bounds = array<i64: 256, 16>}, {transform_indices = @transform_1, window_bounds = array<i64: 256, 8>}, {pipeline_mode = #tpu.pipeline_mode<synchronous>, transform_indices = @transform_2, window_bounds = array<i64: 16, 32>}, {pipeline_mode = #tpu.pipeline_mode<synchronous>, transform_indices = @transform_3, window_bounds = array<i64: 8, 32>}, {pipeline_mode = #tpu.pipeline_mode<synchronous>, transform_indices = @transform_4, window_bounds = array<i64: 1, 32>}, {pipeline_mode = #tpu.pipeline_mode<synchronous>, transform_indices = @transform_5, window_bounds = array<i64: 32, 32>}, {pipeline_mode = #tpu.pipeline_mode<synchronous>, transform_indices = @transform_6, window_bounds = array<i64: 1, 32>}, {pipeline_mode = #tpu.pipeline_mode<synchronous>, transform_indices = @transform_7, window_bounds = array<i64: 8, 32>}, {pipeline_mode = #tpu.pipeline_mode<synchronous>, transform_indices = @transform_8, window_bounds = array<i64: 1, 1>}, {transform_indices = @transform_9, window_bounds = array<i64: 1, 256>}]} {
    %c0 = arith.constant 0 : index
    %c0_0 = arith.constant 0 : index
    %0 = vector.load %arg1[%c0, %c0_0] : memref<256x16xf32, #tpu.memory_space<vmem>>, vector<256x16xf32>
    %c0_1 = arith.constant 0 : index
    %c0_2 = arith.constant 0 : index
    %1 = vector.load %arg3[%c0_1, %c0_2] : memref<16x32xf32, #tpu.memory_space<vmem>>, vector<16x32xf32>
    %cst = arith.constant dense<0.000000e+00> : vector<256x32xf32>
    %2 = tpu.matmul %0, %1, %cst {dimension_numbers = #tpu.dot_dimension_numbers<[1], [0], [0], [1], [0, 0, 1, 1], [], []>} : vector<256x16xf32>, vector<16x32xf32>, vector<256x32xf32> -> vector<256x32xf32>
    %c0_3 = arith.constant 0 : index
    %c0_4 = arith.constant 0 : index
    %3 = vector.load %arg2[%c0_3, %c0_4] : memref<256x8xf32, #tpu.memory_space<vmem>>, vector<256x8xf32>
    %c0_5 = arith.constant 0 : index
    %c0_6 = arith.constant 0 : index
    %4 = vector.load %arg4[%c0_5, %c0_6] : memref<8x32xf32, #tpu.memory_space<vmem>>, vector<8x32xf32>
    %cst_7 = arith.constant dense<0.000000e+00> : vector<256x32xf32>
    %5 = tpu.matmul %3, %4, %cst_7 {dimension_numbers = #tpu.dot_dimension_numbers<[1], [0], [0], [1], [0, 0, 1, 1], [], []>} : vector<256x8xf32>, vector<8x32xf32>, vector<256x32xf32> -> vector<256x32xf32>
    %6 = arith.addf %2, %5 : vector<256x32xf32>
    %c0_8 = arith.constant 0 : index
    %c0_9 = arith.constant 0 : index
    %7 = vector.load %arg5[%c0_8, %c0_9] : memref<1x32xf32, #tpu.memory_space<vmem>>, vector<1x32xf32>
    %8 = vector.broadcast %7 : vector<1x32xf32> to vector<256x32xf32>
    %9 = arith.addf %6, %8 : vector<256x32xf32>
    %cst_10 = arith.constant 0.000000e+00 : f32
    %10 = vector.broadcast %cst_10 : f32 to vector<256x32xf32>
    %11 = arith.maximumf %9, %10 : vector<256x32xf32>
    %c0_11 = arith.constant 0 : index
    %c0_12 = arith.constant 0 : index
    %12 = vector.load %arg6[%c0_11, %c0_12] : memref<32x32xf32, #tpu.memory_space<vmem>>, vector<32x32xf32>
    %cst_13 = arith.constant dense<0.000000e+00> : vector<256x32xf32>
    %13 = tpu.matmul %11, %12, %cst_13 {dimension_numbers = #tpu.dot_dimension_numbers<[1], [0], [0], [1], [0, 0, 1, 1], [], []>} : vector<256x32xf32>, vector<32x32xf32>, vector<256x32xf32> -> vector<256x32xf32>
    %c0_14 = arith.constant 0 : index
    %c0_15 = arith.constant 0 : index
    %14 = vector.load %arg7[%c0_14, %c0_15] : memref<1x32xf32, #tpu.memory_space<vmem>>, vector<1x32xf32>
    %15 = vector.broadcast %14 : vector<1x32xf32> to vector<256x32xf32>
    %16 = arith.addf %13, %15 : vector<256x32xf32>
    %cst_16 = arith.constant 0.000000e+00 : f32
    %17 = vector.broadcast %cst_16 : f32 to vector<256x32xf32>
    %18 = arith.maximumf %16, %17 : vector<256x32xf32>
    %c0_17 = arith.constant 0 : index
    %c0_18 = arith.constant 0 : index
    %19 = vector.load %arg8[%c0_17, %c0_18] : memref<8x32xf32, #tpu.memory_space<vmem>>, vector<8x32xf32>
    %cst_19 = arith.constant dense<0.000000e+00> : vector<8x256xf32>
    %20 = tpu.matmul %19, %18, %cst_19 {dimension_numbers = #tpu.dot_dimension_numbers<[1], [1], [0], [0], [0, 0, 1, 0], [], []>} : vector<8x32xf32>, vector<256x32xf32>, vector<8x256xf32> -> vector<8x256xf32>
    %cst_20 = arith.constant dense<0.000000e+00> : vector<256xf32>
    %21 = vector.multi_reduction <add>, %20, %cst_20 [0] : vector<8x256xf32> to vector<256xf32>
    %22 = vector.shape_cast %21 : vector<256xf32> to vector<1x256xf32>
    %c0_21 = arith.constant 0 : index
    %c0_22 = arith.constant 0 : index
    %23 = vector.load %arg9[%c0_21, %c0_22] : memref<1x1xf32, #tpu.memory_space<vmem>>, vector<1x1xf32>
    %24 = vector.broadcast %23 : vector<1x1xf32> to vector<1x256xf32>
    %25 = arith.addf %22, %24 : vector<1x256xf32>
    %c0_23 = arith.constant 0 : index
    %c0_24 = arith.constant 0 : index
    %26 = vector.load %arg10[%c0_23, %c0_24] : memref<1x256xf32, #tpu.memory_space<vmem>>, vector<1x256xf32>
    tpu.vector_store %arg10[%c0_23, %c0_24], %25 {strides = array<i32>} : memref<1x256xf32, #tpu.memory_space<vmem>>, vector<1x256xf32>,
    return
  }
  func.func @transform_0(%arg0: i32) -> (i32, i32) {
    %c0_i32 = arith.constant 0 : i32
    %c0_i32_0 = arith.constant 0 : i32
    return %arg0, %c0_i32 : i32, i32
  }
  func.func @transform_1(%arg0: i32) -> (i32, i32) {
    %c0_i32 = arith.constant 0 : i32
    %c0_i32_0 = arith.constant 0 : i32
    return %arg0, %c0_i32 : i32, i32
  }
  func.func @transform_2(%arg0: i32) -> (i32, i32) {
    %c0_i32 = arith.constant 0 : i32
    %c0_i32_0 = arith.constant 0 : i32
    %c0_i32_1 = arith.constant 0 : i32
    return %c0_i32, %c0_i32_0 : i32, i32
  }
  func.func @transform_3(%arg0: i32) -> (i32, i32) {
    %c0_i32 = arith.constant 0 : i32
    %c0_i32_0 = arith.constant 0 : i32
    %c0_i32_1 = arith.constant 0 : i32
    return %c0_i32, %c0_i32_0 : i32, i32
  }
  func.func @transform_4(%arg0: i32) -> (i32, i32) {
    %c0_i32 = arith.constant 0 : i32
    %c0_i32_0 = arith.constant 0 : i32
    %c0_i32_1 = arith.constant 0 : i32
    return %c0_i32, %c0_i32_0 : i32, i32
  }
  func.func @transform_5(%arg0: i32) -> (i32, i32) {
    %c0_i32 = arith.constant 0 : i32
    %c0_i32_0 = arith.constant 0 : i32
    %c0_i32_1 = arith.constant 0 : i32
    return %c0_i32, %c0_i32_0 : i32, i32
  }
  func.func @transform_6(%arg0: i32) -> (i32, i32) {
    %c0_i32 = arith.constant 0 : i32
    %c0_i32_0 = arith.constant 0 : i32
    %c0_i32_1 = arith.constant 0 : i32
    return %c0_i32, %c0_i32_0 : i32, i32
  }
  func.func @transform_7(%arg0: i32) -> (i32, i32) {
    %c0_i32 = arith.constant 0 : i32
    %c0_i32_0 = arith.constant 0 : i32
    %c0_i32_1 = arith.constant 0 : i32
    return %c0_i32, %c0_i32_0 : i32, i32
  }
  func.func @transform_8(%arg0: i32) -> (i32, i32) {
    %c0_i32 = arith.constant 0 : i32
    %c0_i32_0 = arith.constant 0 : i32
    %c0_i32_1 = arith.constant 0 : i32
    return %c0_i32, %c0_i32_0 : i32, i32
  }
  func.func @transform_9(%arg0: i32) -> (i32, i32) {
    %c0_i32 = arith.constant 0 : i32
    %c0_i32_0 = arith.constant 0 : i32
    return %c0_i32, %arg0 : i32, i32
  }
}

</mosaic_0001>

<llo_original>
// kernel: qvalue_net_continuous.1
$region0: #{qvalue_net_continuous.1}
  #allocation0 [shape = 'u32[]', space=smem, size = 0x4, offset = 0x4, fixed_abs, tag = 'smem constant byte address 0x4 - core index']
  #allocation1 [shape = 'u32[144,128]{1,0:T(1,128)}', space=vmem, size = 0x12000, scoped, tag = 'internal scratch']
  #allocation2 [shape = 'f32[1,1]{1,0:T(1,128)S(1)}', space=vmem, size = 0x200, scoped, tag = 'scoped memory for qvalue_net_continuous.1']
  %s0 = inlined_call_operand.vmem [shape: f32[512,16], index: 0, kind: input, shape index: {}]
  %s1 = inlined_call_operand.vmem [shape: f32[512,8], index: 1, kind: input, shape index: {}]
  %s2 = inlined_call_operand.vmem [shape: f32[16,32], index: 2, kind: input, shape index: {}]
  %s3 = inlined_call_operand.vmem [shape: f32[8,32], index: 3, kind: input, shape index: {}]
  %s4 = inlined_call_operand.vmem [shape: f32[1,32], index: 4, kind: input, shape index: {}]
  %s5 = inlined_call_operand.vmem [shape: f32[32,32], index: 5, kind: input, shape index: {}]
  %s6 = inlined_call_operand.vmem [shape: f32[1,32], index: 6, kind: input, shape index: {}]
  %s7 = inlined_call_operand.vmem [shape: f32[8,32], index: 7, kind: input, shape index: {}]
  %s8 = inlined_call_operand.<no memory space> [shape: f32[1,1], index: 8, kind: input, shape index: {}]
  %s9 = inlined_call_operand.vmem [shape: f32[1,512], index: 9, kind: output, shape index: {}]
  %s10 = sld [smem:[#allocation0]]
  $region69: #{qvalue_net_continuous.1} parent=0
    _
  %s12 = ssub.s32 1, %s10
  %s13 = scalar_select 0, %s12, %s10
  %v14 = vstv %s8
  %15 = vst [vmem:[#allocation2] sm:$0x1] %v14
  loop: start=0, step=1, limit=4
  $region2: #{qvalue_net_continuous.1} parent=0 // loop_pre_header
    _
  $region3: #{qvalue_net_continuous.1} parent=0 // loop_header
    %s17 = sphi 0, %s21
    %p18 = scmp.ge.s32.totalorder %s17, 4
    %s27 = sphi 0, %s29
    %s30 = sphi 0, %s27
    %s31 = sphi 0, %s30
    %s47 = sphi 0, %s31
    %s53 = sphi 0, %s55
    %s56 = sphi 0, %s53
    %s57 = sphi 0, %s56
    %s73 = sphi 0, %s57
    %s77 = sphi 0, %s77
    %s79 = sphi 0, %s77
    %s80 = sphi 0, %s79
    %s94 = sphi 0, %s80
    %s98 = sphi 0, %s98
    %s100 = sphi 0, %s98
    %s101 = sphi 0, %s100
    %s115 = sphi 0, %s101
    %s119 = sphi 0, %s119
    %s121 = sphi 0, %s119
    %s122 = sphi 0, %s121
    %s136 = sphi 0, %s122
    %s140 = sphi 0, %s140
    %s142 = sphi 0, %s140
    %s143 = sphi 0, %s142
    %s157 = sphi 0, %s143
    %s161 = sphi 0, %s161
    %s163 = sphi 0, %s161
    %s164 = sphi 0, %s163
    %s178 = sphi 0, %s164
    %s182 = sphi 0, %s182
    %s184 = sphi 0, %s182
    %s185 = sphi 0, %s184
    %s199 = sphi 0, %s185
    %s203 = sphi 0, %s203
    %s205 = sphi 0, %s203
    %s206 = sphi 0, %s205
    %s220 = sphi 0, %s206
    %s226 = sphi 0, %s228
    %s229 = sphi 0, %s226
    %s230 = sphi 0, %s229
    %s246 = sphi 0, %s230
  $region4: #{qvalue_net_continuous.1} parent=0 // loop_header_branch
    %20 = sbr.rel (%p18) target = $region8
  $region5: #{qvalue_net_continuous.1} parent=0 // loop_body
    %s22 = ssub.s32 %s17, 1
    %s23 = ssub.s32 %s17, 2
    %s24 = sadd.s32 %s17, 1
    %s25 = ssub.s32 %s17, %s24
    %p26 = scmp.eq.s32.totalorder %s25, 0
    %s28 = sadd.s32 %s27, 1
    %s29 = scalar_select %p26, %s27, %s28
    %p32 = pneg %p26
    %p33 = scmp.eq.s32.totalorder %s17, 1
    %p34 = por %p32, %p33
    %p35 = scmp.ne.s32.totalorder %s27, %s30
    %p36 = scmp.eq.s32.totalorder %s17, 0
    %p37 = por %p35, %p36
    %p38 = scmp.ne.s32.totalorder %s27, %s30
    %p39 = scmp.eq.s32.totalorder %s22, 1
    %p40 = por %p38, %p39
    %p41 = scmp.ne.s32.totalorder %s30, %s31
    %p42 = scmp.eq.s32.totalorder %s22, 0
    %p43 = por %p41, %p42
    %p44 = scmp.ne.s32.totalorder %s30, %s31
    %p45 = scmp.eq.s32.totalorder %s23, 1
    %p46 = por %p44, %p45
    %p48 = scmp.ne.s32.totalorder %s31, %s47
    %p49 = scmp.eq.s32.totalorder %s23, 0
    %p50 = por %p48, %p49
    %s51 = ssub.s32 %s17, %s24
    %p52 = scmp.eq.s32.totalorder %s51, 0
    %s54 = sadd.s32 %s53, 1
    %s55 = scalar_select %p52, %s53, %s54
    %p58 = pneg %p52
    %p59 = scmp.eq.s32.totalorder %s17, 1
    %p60 = por %p58, %p59
    %p61 = scmp.ne.s32.totalorder %s53, %s56
    %p62 = scmp.eq.s32.totalorder %s17, 0
    %p63 = por %p61, %p62
    %p64 = scmp.ne.s32.totalorder %s53, %s56
    %p65 = scmp.eq.s32.totalorder %s22, 1
    %p66 = por %p64, %p65
    %p67 = scmp.ne.s32.totalorder %s56, %s57
    %p68 = scmp.eq.s32.totalorder %s22, 0
    %p69 = por %p67, %p68
    %p70 = scmp.ne.s32.totalorder %s56, %s57
    %p71 = scmp.eq.s32.totalorder %s23, 1
    %p72 = por %p70, %p71
    %p74 = scmp.ne.s32.totalorder %s57, %s73
    %p75 = scmp.eq.s32.totalorder %s23, 0
    %p76 = por %p74, %p75
    %s78 = sadd.s32 %s77, 1
    %p81 = scmp.eq.s32.totalorder %s17, 1
    %p82 = scmp.ne.s32.totalorder %s77, %s79
    %p83 = scmp.eq.s32.totalorder %s17, 0
    %p84 = por %p82, %p83
    %p85 = scmp.ne.s32.totalorder %s77, %s79
    %p86 = scmp.eq.s32.totalorder %s22, 1
    %p87 = por %p85, %p86
    %p88 = scmp.ne.s32.totalorder %s79, %s80
    %p89 = scmp.eq.s32.totalorder %s22, 0
    %p90 = por %p88, %p89
    %p91 = scmp.ne.s32.totalorder %s79, %s80
    %p92 = scmp.eq.s32.totalorder %s23, 1
    %p93 = por %p91, %p92
    %p95 = scmp.ne.s32.totalorder %s80, %s94
    %p96 = scmp.eq.s32.totalorder %s23, 0
    %p97 = por %p95, %p96
    %s99 = sadd.s32 %s98, 1
    %p102 = scmp.eq.s32.totalorder %s17, 1
    %p103 = scmp.ne.s32.totalorder %s98, %s100
    %p104 = scmp.eq.s32.totalorder %s17, 0
    %p105 = por %p103, %p104
    %p106 = scmp.ne.s32.totalorder %s98, %s100
    %p107 = scmp.eq.s32.totalorder %s22, 1
    %p108 = por %p106, %p107
    %p109 = scmp.ne.s32.totalorder %s100, %s101
    %p110 = scmp.eq.s32.totalorder %s22, 0
    %p111 = por %p109, %p110
    %p112 = scmp.ne.s32.totalorder %s100, %s101
    %p113 = scmp.eq.s32.totalorder %s23, 1
    %p114 = por %p112, %p113
    %p116 = scmp.ne.s32.totalorder %s101, %s115
    %p117 = scmp.eq.s32.totalorder %s23, 0
    %p118 = por %p116, %p117
    %s120 = sadd.s32 %s119, 1
    %p123 = scmp.eq.s32.totalorder %s17, 1
    %p124 = scmp.ne.s32.totalorder %s119, %s121
    %p125 = scmp.eq.s32.totalorder %s17, 0
    %p126 = por %p124, %p125
    %p127 = scmp.ne.s32.totalorder %s119, %s121
    %p128 = scmp.eq.s32.totalorder %s22, 1
    %p129 = por %p127, %p128
    %p130 = scmp.ne.s32.totalorder %s121, %s122
    %p131 = scmp.eq.s32.totalorder %s22, 0
    %p132 = por %p130, %p131
    %p133 = scmp.ne.s32.totalorder %s121, %s122
    %p134 = scmp.eq.s32.totalorder %s23, 1
    %p135 = por %p133, %p134
    %p137 = scmp.ne.s32.totalorder %s122, %s136
    %p138 = scmp.eq.s32.totalorder %s23, 0
    %p139 = por %p137, %p138
    %s141 = sadd.s32 %s140, 1
    %p144 = scmp.eq.s32.totalorder %s17, 1
    %p145 = scmp.ne.s32.totalorder %s140, %s142
    %p146 = scmp.eq.s32.totalorder %s17, 0
    %p147 = por %p145, %p146
    %p148 = scmp.ne.s32.totalorder %s140, %s142
    %p149 = scmp.eq.s32.totalorder %s22, 1
    %p150 = por %p148, %p149
    %p151 = scmp.ne.s32.totalorder %s142, %s143
    %p152 = scmp.eq.s32.totalorder %s22, 0
    %p153 = por %p151, %p152
    %p154 = scmp.ne.s32.totalorder %s142, %s143
    %p155 = scmp.eq.s32.totalorder %s23, 1
    %p156 = por %p154, %p155
    %p158 = scmp.ne.s32.totalorder %s143, %s157
    %p159 = scmp.eq.s32.totalorder %s23, 0
    %p160 = por %p158, %p159
    %s162 = sadd.s32 %s161, 1
    %p165 = scmp.eq.s32.totalorder %s17, 1
    %p166 = scmp.ne.s32.totalorder %s161, %s163
    %p167 = scmp.eq.s32.totalorder %s17, 0
    %p168 = por %p166, %p167
    %p169 = scmp.ne.s32.totalorder %s161, %s163
    %p170 = scmp.eq.s32.totalorder %s22, 1
    %p171 = por %p169, %p170
    %p172 = scmp.ne.s32.totalorder %s163, %s164
    %p173 = scmp.eq.s32.totalorder %s22, 0
    %p174 = por %p172, %p173
    %p175 = scmp.ne.s32.totalorder %s163, %s164
    %p176 = scmp.eq.s32.totalorder %s23, 1
    %p177 = por %p175, %p176
    %p179 = scmp.ne.s32.totalorder %s164, %s178
    %p180 = scmp.eq.s32.totalorder %s23, 0
    %p181 = por %p179, %p180
    %s183 = sadd.s32 %s182, 1
    %p186 = scmp.eq.s32.totalorder %s17, 1
    %p187 = scmp.ne.s32.totalorder %s182, %s184
    %p188 = scmp.eq.s32.totalorder %s17, 0
    %p189 = por %p187, %p188
    %p190 = scmp.ne.s32.totalorder %s182, %s184
    %p191 = scmp.eq.s32.totalorder %s22, 1
    %p192 = por %p190, %p191
    %p193 = scmp.ne.s32.totalorder %s184, %s185
    %p194 = scmp.eq.s32.totalorder %s22, 0
    %p195 = por %p193, %p194
    %p196 = scmp.ne.s32.totalorder %s184, %s185
    %p197 = scmp.eq.s32.totalorder %s23, 1
    %p198 = por %p196, %p197
    %p200 = scmp.ne.s32.totalorder %s185, %s199
    %p201 = scmp.eq.s32.totalorder %s23, 0
    %p202 = por %p200, %p201
    %s204 = sadd.s32 %s203, 1
    %p207 = scmp.eq.s32.totalorder %s17, 1
    %p208 = scmp.ne.s32.totalorder %s203, %s205
    %p209 = scmp.eq.s32.totalorder %s17, 0
    %p210 = por %p208, %p209
    %p211 = scmp.ne.s32.totalorder %s203, %s205
    %p212 = scmp.eq.s32.totalorder %s22, 1
    %p213 = por %p211, %p212
    %p214 = scmp.ne.s32.totalorder %s205, %s206
    %p215 = scmp.eq.s32.totalorder %s22, 0
    %p216 = por %p214, %p215
    %p217 = scmp.ne.s32.totalorder %s205, %s206
    %p218 = scmp.eq.s32.totalorder %s23, 1
    %p219 = por %p217, %p218
    %p221 = scmp.ne.s32.totalorder %s206, %s220
    %p222 = scmp.eq.s32.totalorder %s23, 0
    %p223 = por %p221, %p222
    %s224 = ssub.s32 %s17, %s24
    %p225 = scmp.eq.s32.totalorder %s224, 0
    %s227 = sadd.s32 %s226, 1
    %s228 = scalar_select %p225, %s226, %s227
    %p231 = pneg %p225
    %p232 = scmp.eq.s32.totalorder %s17, 1
    %p233 = por %p231, %p232
    %p234 = scmp.ne.s32.totalorder %s226, %s229
    %p235 = scmp.eq.s32.totalorder %s17, 0
    %p236 = por %p234, %p235
    %p237 = scmp.ne.s32.totalorder %s226, %s229
    %p238 = scmp.eq.s32.totalorder %s22, 1
    %p239 = por %p237, %p238
    %p240 = scmp.ne.s32.totalorder %s229, %s230
    %p241 = scmp.eq.s32.totalorder %s22, 0
    %p242 = por %p240, %p241
    %p243 = scmp.ne.s32.totalorder %s229, %s230
    %p244 = scmp.eq.s32.totalorder %s23, 1
    %p245 = por %p243, %p244
    %p247 = scmp.ne.s32.totalorder %s230, %s246
    %p248 = scmp.eq.s32.totalorder %s23, 0
    %p249 = por %p247, %p248
    %p250 = scmp.le.s32.totalorder 1, %s17
    %p251 = scmp.lt.s32.totalorder %s17, 3
    %p252 = pnand %p250, %p251
    %p253 = pneg %p252
    // Predicated region
    $region9: #{qvalue_net_continuous.1} parent=5 // pred_check
      _
    $region10: #{qvalue_net_continuous.1} parent=5 // pred_check_branch
      %255 = sbr.rel (%p252) target = $region12
    $region11: #{qvalue_net_continuous.1} parent=5 // pred_region
      %s256 = ssub.s32 %s17, 1
      // Predicated region
      $region13: #{qvalue_net_continuous.1} parent=11 // pred_check
        %p257 = pneg %p90
      $region14: #{qvalue_net_continuous.1} parent=11 // pred_check_branch
        %259 = sbr.rel (%p257) target = $region16
      $region15: #{qvalue_net_continuous.1} parent=11 // pred_region
        _
      $region16: #{qvalue_net_continuous.1} parent=11 // pred_fallthru
        _
      // Predicated region
      $region17: #{qvalue_net_continuous.1} parent=11 // pred_check
        %p260 = pneg %p111
      $region18: #{qvalue_net_continuous.1} parent=11 // pred_check_branch
        %262 = sbr.rel (%p260) target = $region20
      $region19: #{qvalue_net_continuous.1} parent=11 // pred_region
        _
      $region20: #{qvalue_net_continuous.1} parent=11 // pred_fallthru
        _
      // Predicated region
      $region21: #{qvalue_net_continuous.1} parent=11 // pred_check
        %p263 = pneg %p132
      $region22: #{qvalue_net_continuous.1} parent=11 // pred_check_branch
        %265 = sbr.rel (%p263) target = $region24
      $region23: #{qvalue_net_continuous.1} parent=11 // pred_region
        _
      $region24: #{qvalue_net_continuous.1} parent=11 // pred_fallthru
        _
      // Predicated region
      $region25: #{qvalue_net_continuous.1} parent=11 // pred_check
        %p266 = pneg %p153
      $region26: #{qvalue_net_continuous.1} parent=11 // pred_check_branch
        %268 = sbr.rel (%p266) target = $region28
      $region27: #{qvalue_net_continuous.1} parent=11 // pred_region
        _
      $region28: #{qvalue_net_continuous.1} parent=11 // pred_fallthru
        _
      // Predicated region
      $region29: #{qvalue_net_continuous.1} parent=11 // pred_check
        %p269 = pneg %p174
      $region30: #{qvalue_net_continuous.1} parent=11 // pred_check_branch
        %271 = sbr.rel (%p269) target = $region32
      $region31: #{qvalue_net_continuous.1} parent=11 // pred_region
        _
      $region32: #{qvalue_net_continuous.1} parent=11 // pred_fallthru
        _
      // Predicated region
      $region33: #{qvalue_net_continuous.1} parent=11 // pred_check
        %p272 = pneg %p195
      $region34: #{qvalue_net_continuous.1} parent=11 // pred_check_branch
        %274 = sbr.rel (%p272) target = $region36
      $region35: #{qvalue_net_continuous.1} parent=11 // pred_region
        _
      $region36: #{qvalue_net_continuous.1} parent=11 // pred_fallthru
        _
      // Predicated region
      $region37: #{qvalue_net_continuous.1} parent=11 // pred_check
        %p275 = pneg %p216
      $region38: #{qvalue_net_continuous.1} parent=11 // pred_check_branch
        %277 = sbr.rel (%p275) target = $region40
      $region39: #{qvalue_net_continuous.1} parent=11 // pred_region
        _
      $region40: #{qvalue_net_continuous.1} parent=11 // pred_fallthru
        _
    $region12: #{qvalue_net_continuous.1} parent=5 // pred_fallthru
      _
    %p278 = scmp.lt.s32.totalorder %s17, 2
    // Predicated region
    $region41: #{qvalue_net_continuous.1} parent=5 // pred_check
      %p279 = pneg %p278
    $region42: #{qvalue_net_continuous.1} parent=5 // pred_check_branch
      %281 = sbr.rel (%p279) target = $region44
    $region43: #{qvalue_net_continuous.1} parent=5 // pred_region
      // Predicated region
      $region45: #{qvalue_net_continuous.1} parent=43 // pred_check
        %p282 = pneg %p37
      $region46: #{qvalue_net_continuous.1} parent=43 // pred_check_branch
        %284 = sbr.rel (%p282) target = $region48
      $region47: #{qvalue_net_continuous.1} parent=43 // pred_region
        %s285 = smul.u32 32, %s17
        %p286 = scmp.lt.s32.totalorder %s285, 63
        %s287 = scalar_select %p286, %s285, 63
        %s288 = smul.addr %s287, 8
        %s289 = scalar_lea.vmem %s0, %s288
        %s290 = smul.u32 32, %s17
      $region48: #{qvalue_net_continuous.1} parent=43 // pred_fallthru
        _
      // Predicated region
      $region49: #{qvalue_net_continuous.1} parent=43 // pred_check
        %p291 = pneg %p63
      $region50: #{qvalue_net_continuous.1} parent=43 // pred_check_branch
        %293 = sbr.rel (%p291) target = $region52
      $region51: #{qvalue_net_continuous.1} parent=43 // pred_region
        %s294 = smul.u32 32, %s17
        %p295 = scmp.lt.s32.totalorder %s294, 63
        %s296 = scalar_select %p295, %s294, 63
        %s297 = smul.addr %s296, 8
        %s298 = scalar_lea.vmem %s1, %s297
        %s299 = smul.u32 32, %s17
      $region52: #{qvalue_net_continuous.1} parent=43 // pred_fallthru
        _
    $region44: #{qvalue_net_continuous.1} parent=5 // pred_fallthru
      _
    %p300 = scmp.le.s32.totalorder 1, %s17
    %p301 = scmp.lt.s32.totalorder %s17, 3
    %p302 = pnand %p300, %p301
    %p303 = pneg %p302
    // Predicated region
    $region53: #{qvalue_net_continuous.1} parent=5 // pred_check
      _
    $region54: #{qvalue_net_continuous.1} parent=5 // pred_check_branch
      %305 = sbr.rel (%p302) target = $region56
    $region55: #{qvalue_net_continuous.1} parent=5 // pred_region
      %s306 = ssub.s32 %s17, 1
      %s307 = smul.u32 32, %s22
      %p308 = scmp.lt.s32.totalorder %s307, 63
      %s309 = scalar_select %p308, %s307, 63
      %s310 = smul.addr %s309, 8
      %s311 = scalar_lea.vmem %s0, %s310
      %p312 = pneg %p43
      %p313 = pneg %p40
      %s314 = smul.u32 32, %s22
      %p315 = scmp.lt.s32.totalorder %s314, 63
      %s316 = scalar_select %p315, %s314, 63
      %s317 = smul.addr %s316, 8
      %s318 = scalar_lea.vmem %s1, %s317
      %p319 = pneg %p69
      %p320 = pneg %p66
      %p321 = pneg %p90
      %p322 = pneg %p87
      %p323 = pneg %p111
      %p324 = pneg %p108
      %p325 = pneg %p132
      %p326 = pneg %p129
      %p327 = pneg %p153
      %p328 = pneg %p150
      %p329 = pneg %p174
      %p330 = pneg %p171
      %p331 = pneg %p195
      %p332 = pneg %p192
      %p333 = pneg %p216
      %p334 = pneg %p213
      %p335 = pneg %p242
      %p336 = pneg %p239
      %s337 = smul.u32 2, %s22
      %p338 = scmp.lt.s32.totalorder %s337, 3
      %s339 = scalar_select %p338, %s337, 3
      %s340 = scalar_lea.vmem %s9, %s339
      %s341 = smul.u32 32, %s22
      %p342 = scmp.lt.s32.totalorder %s341, 63
      %s343 = scalar_select %p342, %s341, 63
      %s344 = smul.addr %s343, 8
      %s345 = scalar_lea.vmem %s0, %s344
      %s346 = smul.u32 32, %s22
      %s347 = smul.u32 32, %s22
      %p348 = scmp.lt.s32.totalorder %s347, 63
      %s349 = scalar_select %p348, %s347, 63
      %s350 = smul.addr %s349, 8
      %s351 = scalar_lea.vmem %s1, %s350
      %s352 = smul.u32 32, %s22
      %s353 = smul.u32 2, %s22
      %p354 = scmp.lt.s32.totalorder %s353, 3
      %s355 = scalar_select %p354, %s353, 3
      %s356 = scalar_lea.vmem %s9, %s355
      %s357 = smul.u32 2, %s22
      %v358 = vld [vmem:[%s345] sm:$0xff]
      %v359 = vld [vmem:[%s345 + $0x8] sm:$0xff]
      %v360 = vld [vmem:[%s345 + $0x10] sm:$0xff]
      %v361 = vld [vmem:[%s345 + $0x18] sm:$0xff]
      %v362 = vld [vmem:[%s345 + $0x20] sm:$0xff]
      %v363 = vld [vmem:[%s345 + $0x28] sm:$0xff]
      %v364 = vld [vmem:[%s345 + $0x30] sm:$0xff]
      %v365 = vld [vmem:[%s345 + $0x38] sm:$0xff]
      %v366 = vld [vmem:[%s345 + $0x40] sm:$0xff]
      %v367 = vld [vmem:[%s345 + $0x48] sm:$0xff]
      %v368 = vld [vmem:[%s345 + $0x50] sm:$0xff]
      %v369 = vld [vmem:[%s345 + $0x58] sm:$0xff]
      %v370 = vld [vmem:[%s345 + $0x60] sm:$0xff]
      %v371 = vld [vmem:[%s345 + $0x68] sm:$0xff]
      %v372 = vld [vmem:[%s345 + $0x70] sm:$0xff]
      %v373 = vld [vmem:[%s345 + $0x78] sm:$0xff]
      %v374 = vld [vmem:[%s345 + $0x80] sm:$0xff]
      %v375 = vld [vmem:[%s345 + $0x88] sm:$0xff]
      %v376 = vld [vmem:[%s345 + $0x90] sm:$0xff]
      %v377 = vld [vmem:[%s345 + $0x98] sm:$0xff]
      %v378 = vld [vmem:[%s345 + $0xa0] sm:$0xff]
      %v379 = vld [vmem:[%s345 + $0xa8] sm:$0xff]
      %v380 = vld [vmem:[%s345 + $0xb0] sm:$0xff]
      %v381 = vld [vmem:[%s345 + $0xb8] sm:$0xff]
      %v382 = vld [vmem:[%s345 + $0xc0] sm:$0xff]
      %v383 = vld [vmem:[%s345 + $0xc8] sm:$0xff]
      %v384 = vld [vmem:[%s345 + $0xd0] sm:$0xff]
      %v385 = vld [vmem:[%s345 + $0xd8] sm:$0xff]
      %v386 = vld [vmem:[%s345 + $0xe0] sm:$0xff]
      %v387 = vld [vmem:[%s345 + $0xe8] sm:$0xff]
      %v388 = vld [vmem:[%s345 + $0xf0] sm:$0xff]
      %v389 = vld [vmem:[%s345 + $0xf8] sm:$0xff]
      %v390 = vld [vmem:[%s2] sm:$0xff]
      %v391 = vld [vmem:[%s2 + $0x8] sm:$0xff]
      %v392 = vld [vmem:[%s351] sm:$0xff]
      %v393 = vld [vmem:[%s351 + $0x8] sm:$0xff]
      %v394 = vld [vmem:[%s351 + $0x10] sm:$0xff]
      %v395 = vld [vmem:[%s351 + $0x18] sm:$0xff]
      %v396 = vld [vmem:[%s351 + $0x20] sm:$0xff]
      %v397 = vld [vmem:[%s351 + $0x28] sm:$0xff]
      %v398 = vld [vmem:[%s351 + $0x30] sm:$0xff]
      %v399 = vld [vmem:[%s351 + $0x38] sm:$0xff]
      %v400 = vld [vmem:[%s351 + $0x40] sm:$0xff]
      %v401 = vld [vmem:[%s351 + $0x48] sm:$0xff]
      %v402 = vld [vmem:[%s351 + $0x50] sm:$0xff]
      %v403 = vld [vmem:[%s351 + $0x58] sm:$0xff]
      %v404 = vld [vmem:[%s351 + $0x60] sm:$0xff]
      %v405 = vld [vmem:[%s351 + $0x68] sm:$0xff]
      %v406 = vld [vmem:[%s351 + $0x70] sm:$0xff]
      %v407 = vld [vmem:[%s351 + $0x78] sm:$0xff]
      %v408 = vld [vmem:[%s351 + $0x80] sm:$0xff]
      %v409 = vld [vmem:[%s351 + $0x88] sm:$0xff]
      %v410 = vld [vmem:[%s351 + $0x90] sm:$0xff]
      %v411 = vld [vmem:[%s351 + $0x98] sm:$0xff]
      %v412 = vld [vmem:[%s351 + $0xa0] sm:$0xff]
      %v413 = vld [vmem:[%s351 + $0xa8] sm:$0xff]
      %v414 = vld [vmem:[%s351 + $0xb0] sm:$0xff]
      %v415 = vld [vmem:[%s351 + $0xb8] sm:$0xff]
      %v416 = vld [vmem:[%s351 + $0xc0] sm:$0xff]
      %v417 = vld [vmem:[%s351 + $0xc8] sm:$0xff]
      %v418 = vld [vmem:[%s351 + $0xd0] sm:$0xff]
      %v419 = vld [vmem:[%s351 + $0xd8] sm:$0xff]
      %v420 = vld [vmem:[%s351 + $0xe0] sm:$0xff]
      %v421 = vld [vmem:[%s351 + $0xe8] sm:$0xff]
      %v422 = vld [vmem:[%s351 + $0xf0] sm:$0xff]
      %v423 = vld [vmem:[%s351 + $0xf8] sm:$0xff]
      %v424 = vld [vmem:[%s3] sm:$0xff]
      %vm425 = vcmask 64512
      %v427 = vsel %vm425, %v392, 0
      %v430 = vsel %vm425, %v393, 0
      %v433 = vsel %vm425, %v394, 0
      %v436 = vsel %vm425, %v395, 0
      %v439 = vsel %vm425, %v396, 0
      %v442 = vsel %vm425, %v397, 0
      %v445 = vsel %vm425, %v398, 0
      %v448 = vsel %vm425, %v399, 0
      %v451 = vsel %vm425, %v400, 0
      %v454 = vsel %vm425, %v401, 0
      %v457 = vsel %vm425, %v402, 0
      %v460 = vsel %vm425, %v403, 0
      %v463 = vsel %vm425, %v404, 0
      %v466 = vsel %vm425, %v405, 0
      %v469 = vsel %vm425, %v406, 0
      %v472 = vsel %vm425, %v407, 0
      %v475 = vsel %vm425, %v408, 0
      %v478 = vsel %vm425, %v409, 0
      %v481 = vsel %vm425, %v410, 0
      %v484 = vsel %vm425, %v411, 0
      %v487 = vsel %vm425, %v412, 0
      %v490 = vsel %vm425, %v413, 0
      %v493 = vsel %vm425, %v414, 0
      %v496 = vsel %vm425, %v415, 0
      %v499 = vsel %vm425, %v416, 0
      %v502 = vsel %vm425, %v417, 0
      %v505 = vsel %vm425, %v418, 0
      %v508 = vsel %vm425, %v419, 0
      %v511 = vsel %vm425, %v420, 0
      %v514 = vsel %vm425, %v421, 0
      %v517 = vsel %vm425, %v422, 0
      %v520 = vsel %vm425, %v423, 0
      %522 = vmatprep.subr.mxu0 0.0
      %523 = vmatpush1.msra.mxu0 0.0
      %524 = vmatprep.subr.mxu0 0.0
      %525 = vmatpush1.msra.mxu0 0.0
      %526 = vmatprep.subr.mxu0 0.0
      %527 = vmatpush1.msra.mxu0 0.0
      %528 = vmatprep.subr.mxu0 0.0
      %529 = vmatpush1.msra.mxu0 0.0
      %530 = vmatprep.subr.mxu0 0.0
      %531 = vmatpush1.msra.mxu0 0.0
      %532 = vmatprep.subr.mxu0 0.0
      %533 = vmatpush1.msra.mxu0 0.0
      %534 = vmatprep.subr.mxu0 0.0
      %535 = vmatpush1.msra.mxu0 0.0
      %536 = vmatprep.subr.mxu0 0.0
      %537 = vmatpush1.msra.mxu0 0.0
      %538 = vmatprep.subr.mxu0 0.0
      %539 = vmatpush1.msra.mxu0 0.0
      %540 = vmatprep.subr.mxu0 0.0
      %541 = vmatpush1.msra.mxu0 0.0
      %542 = vmatprep.subr.mxu0 0.0
      %543 = vmatpush1.msra.mxu0 0.0
      %544 = vmatprep.subr.mxu0 0.0
      %545 = vmatpush1.msra.mxu0 0.0
      %546 = vmatprep.subr.mxu0 0.0
      %547 = vmatpush1.msra.mxu0 0.0
      %548 = vmatprep.subr.mxu0 0.0
      %549 = vmatpush1.msra.mxu0 0.0
      %550 = vmatprep.subr.mxu0 0.0
      %551 = vmatpush1.msra.mxu0 0.0
      %552 = vmatprep.subr.mxu0 0.0
      %553 = vmatpush1.msra.mxu0 %v424
      %554 = vmatprep.subr.mxu0 0.0
      %555 = vmatpush2.msra.mxu0 0.0
      %556 = vmatprep.subr.mxu0 0.0
      %557 = vmatpush2.msra.mxu0 0.0
      %558 = vmatprep.subr.mxu0 0.0
      %559 = vmatpush2.msra.mxu0 0.0
      %560 = vmatprep.subr.mxu0 0.0
      %561 = vmatpush2.msra.mxu0 0.0
      %562 = vmatprep.subr.mxu0 0.0
      %563 = vmatpush2.msra.mxu0 0.0
      %564 = vmatprep.subr.mxu0 0.0
      %565 = vmatpush2.msra.mxu0 0.0
      %566 = vmatprep.subr.mxu0 0.0
      %567 = vmatpush2.msra.mxu0 0.0
      %568 = vmatprep.subr.mxu0 0.0
      %569 = vmatpush2.msra.mxu0 0.0
      %570 = vmatprep.subr.mxu0 0.0
      %571 = vmatpush2.msra.mxu0 0.0
      %572 = vmatprep.subr.mxu0 0.0
      %573 = vmatpush2.msra.mxu0 0.0
      %574 = vmatprep.subr.mxu0 0.0
      %575 = vmatpush2.msra.mxu0 0.0
      %576 = vmatprep.subr.mxu0 0.0
      %577 = vmatpush2.msra.mxu0 0.0
      %578 = vmatprep.subr.mxu0 0.0
      %579 = vmatpush2.msra.mxu0 0.0
      %580 = vmatprep.subr.mxu0 0.0
      %581 = vmatpush2.msra.mxu0 0.0
      %582 = vmatprep.subr.mxu0 0.0
      %583 = vmatpush2.msra.mxu0 0.0
      %584 = vmatprep.subr.mxu0 0.0
      %585 = vmatpush2.msra.mxu0 0.0
      %586 = vmatprep.mubr.f32.mxu0 0.0
      %587 = vmatmul.mubr.f32.gmra.mxu0 %v427
      %v588 = vpop.f32.mrf.mxu0
      %v589 = vadd.f32 0.0, %v588
      %v590 = vpop.f32.mrf.mxu0
      %591 = vmatprep.mubr.f32.mxu0 0.0
      %592 = vmatmul.mubr.f32.gmra.mxu0 %v430
      %v593 = vpop.f32.mrf.mxu0
      %v594 = vadd.f32 0.0, %v593
      %v595 = vpop.f32.mrf.mxu0
      %596 = vmatprep.mubr.f32.mxu0 0.0
      %597 = vmatmul.mubr.f32.gmra.mxu0 %v433
      %v598 = vpop.f32.mrf.mxu0
      %v599 = vadd.f32 0.0, %v598
      %v600 = vpop.f32.mrf.mxu0
      %601 = vmatprep.mubr.f32.mxu0 0.0
      %602 = vmatmul.mubr.f32.gmra.mxu0 %v436
      %v603 = vpop.f32.mrf.mxu0
      %v604 = vadd.f32 0.0, %v603
      %v605 = vpop.f32.mrf.mxu0
      %606 = vmatprep.mubr.f32.mxu0 0.0
      %607 = vmatmul.mubr.f32.gmra.mxu0 %v439
      %v608 = vpop.f32.mrf.mxu0
      %v609 = vadd.f32 0.0, %v608
      %v610 = vpop.f32.mrf.mxu0
      %611 = vmatprep.mubr.f32.mxu0 0.0
      %612 = vmatmul.mubr.f32.gmra.mxu0 %v442
      %v613 = vpop.f32.mrf.mxu0
      %v614 = vadd.f32 0.0, %v613
      %v615 = vpop.f32.mrf.mxu0
      %616 = vmatprep.mubr.f32.mxu0 0.0
      %617 = vmatmul.mubr.f32.gmra.mxu0 %v445
      %v618 = vpop.f32.mrf.mxu0
      %v619 = vadd.f32 0.0, %v618
      %v620 = vpop.f32.mrf.mxu0
      %621 = vmatprep.mubr.f32.mxu0 0.0
      %622 = vmatmul.mubr.f32.gmra.mxu0 %v448
      %v623 = vpop.f32.mrf.mxu0
      %v624 = vadd.f32 0.0, %v623
      %v625 = vpop.f32.mrf.mxu0
      %626 = vmatprep.mubr.f32.mxu0 0.0
      %627 = vmatmul.mubr.f32.gmra.mxu0 %v451
      %v628 = vpop.f32.mrf.mxu0
      %v629 = vadd.f32 0.0, %v628
      %v630 = vpop.f32.mrf.mxu0
      %631 = vmatprep.mubr.f32.mxu0 0.0
      %632 = vmatmul.mubr.f32.gmra.mxu0 %v454
      %v633 = vpop.f32.mrf.mxu0
      %v634 = vadd.f32 0.0, %v633
      %v635 = vpop.f32.mrf.mxu0
      %636 = vmatprep.mubr.f32.mxu0 0.0
      %637 = vmatmul.mubr.f32.gmra.mxu0 %v457
      %v638 = vpop.f32.mrf.mxu0
      %v639 = vadd.f32 0.0, %v638
      %v640 = vpop.f32.mrf.mxu0
      %641 = vmatprep.mubr.f32.mxu0 0.0
      %642 = vmatmul.mubr.f32.gmra.mxu0 %v460
      %v643 = vpop.f32.mrf.mxu0
      %v644 = vadd.f32 0.0, %v643
      %v645 = vpop.f32.mrf.mxu0
      %646 = vmatprep.mubr.f32.mxu0 0.0
      %647 = vmatmul.mubr.f32.gmra.mxu0 %v463
      %v648 = vpop.f32.mrf.mxu0
      %v649 = vadd.f32 0.0, %v648
      %v650 = vpop.f32.mrf.mxu0
      %651 = vmatprep.mubr.f32.mxu0 0.0
      %652 = vmatmul.mubr.f32.gmra.mxu0 %v466
      %v653 = vpop.f32.mrf.mxu0
      %v654 = vadd.f32 0.0, %v653
      %v655 = vpop.f32.mrf.mxu0
      %656 = vmatprep.mubr.f32.mxu0 0.0
      %657 = vmatmul.mubr.f32.gmra.mxu0 %v469
      %v658 = vpop.f32.mrf.mxu0
      %v659 = vadd.f32 0.0, %v658
      %v660 = vpop.f32.mrf.mxu0
      %661 = vmatprep.mubr.f32.mxu0 0.0
      %662 = vmatmul.mubr.f32.gmra.mxu0 %v472
      %v663 = vpop.f32.mrf.mxu0
      %v664 = vadd.f32 0.0, %v663
      %v665 = vpop.f32.mrf.mxu0
      %666 = vmatprep.mubr.f32.mxu0 0.0
      %667 = vmatmul.mubr.f32.gmra.mxu0 %v475
      %v668 = vpop.f32.mrf.mxu0
      %v669 = vadd.f32 0.0, %v668
      %v670 = vpop.f32.mrf.mxu0
      %671 = vmatprep.mubr.f32.mxu0 0.0
      %672 = vmatmul.mubr.f32.gmra.mxu0 %v478
      %v673 = vpop.f32.mrf.mxu0
      %v674 = vadd.f32 0.0, %v673
      %v675 = vpop.f32.mrf.mxu0
      %676 = vmatprep.mubr.f32.mxu0 0.0
      %677 = vmatmul.mubr.f32.gmra.mxu0 %v481
      %v678 = vpop.f32.mrf.mxu0
      %v679 = vadd.f32 0.0, %v678
      %v680 = vpop.f32.mrf.mxu0
      %681 = vmatprep.mubr.f32.mxu0 0.0
      %682 = vmatmul.mubr.f32.gmra.mxu0 %v484
      %v683 = vpop.f32.mrf.mxu0
      %v684 = vadd.f32 0.0, %v683
      %v685 = vpop.f32.mrf.mxu0
      %686 = vmatprep.mubr.f32.mxu0 0.0
      %687 = vmatmul.mubr.f32.gmra.mxu0 %v487
      %v688 = vpop.f32.mrf.mxu0
      %v689 = vadd.f32 0.0, %v688
      %v690 = vpop.f32.mrf.mxu0
      %691 = vmatprep.mubr.f32.mxu0 0.0
      %692 = vmatmul.mubr.f32.gmra.mxu0 %v490
      %v693 = vpop.f32.mrf.mxu0
      %v694 = vadd.f32 0.0, %v693
      %v695 = vpop.f32.mrf.mxu0
      %696 = vmatprep.mubr.f32.mxu0 0.0
      %697 = vmatmul.mubr.f32.gmra.mxu0 %v493
      %v698 = vpop.f32.mrf.mxu0
      %v699 = vadd.f32 0.0, %v698
      %v700 = vpop.f32.mrf.mxu0
      %701 = vmatprep.mubr.f32.mxu0 0.0
      %702 = vmatmul.mubr.f32.gmra.mxu0 %v496
      %v703 = vpop.f32.mrf.mxu0
      %v704 = vadd.f32 0.0, %v703
      %v705 = vpop.f32.mrf.mxu0
      %706 = vmatprep.mubr.f32.mxu0 0.0
      %707 = vmatmul.mubr.f32.gmra.mxu0 %v499
      %v708 = vpop.f32.mrf.mxu0
      %v709 = vadd.f32 0.0, %v708
      %v710 = vpop.f32.mrf.mxu0
      %711 = vmatprep.mubr.f32.mxu0 0.0
      %712 = vmatmul.mubr.f32.gmra.mxu0 %v502
      %v713 = vpop.f32.mrf.mxu0
      %v714 = vadd.f32 0.0, %v713
      %v715 = vpop.f32.mrf.mxu0
      %716 = vmatprep.mubr.f32.mxu0 0.0
      %717 = vmatmul.mubr.f32.gmra.mxu0 %v505
      %v718 = vpop.f32.mrf.mxu0
      %v719 = vadd.f32 0.0, %v718
      %v720 = vpop.f32.mrf.mxu0
      %721 = vmatprep.mubr.f32.mxu0 0.0
      %722 = vmatmul.mubr.f32.gmra.mxu0 %v508
      %v723 = vpop.f32.mrf.mxu0
      %v724 = vadd.f32 0.0, %v723
      %v725 = vpop.f32.mrf.mxu0
      %726 = vmatprep.mubr.f32.mxu0 0.0
      %727 = vmatmul.mubr.f32.gmra.mxu0 %v511
      %v728 = vpop.f32.mrf.mxu0
      %v729 = vadd.f32 0.0, %v728
      %v730 = vpop.f32.mrf.mxu0
      %731 = vmatprep.mubr.f32.mxu0 0.0
      %732 = vmatmul.mubr.f32.gmra.mxu0 %v514
      %v733 = vpop.f32.mrf.mxu0
      %v734 = vadd.f32 0.0, %v733
      %v735 = vpop.f32.mrf.mxu0
      %736 = vmatprep.mubr.f32.mxu0 0.0
      %737 = vmatmul.mubr.f32.gmra.mxu0 %v517
      %v738 = vpop.f32.mrf.mxu0
      %v739 = vadd.f32 0.0, %v738
      %v740 = vpop.f32.mrf.mxu0
      %741 = vmatprep.mubr.f32.mxu0 0.0
      %742 = vmatmul.mubr.f32.gmra.mxu0 %v520
      %v743 = vpop.f32.mrf.mxu0
      %v744 = vadd.f32 0.0, %v743
      %v745 = vpop.f32.mrf.mxu0
      %746 = vdwg.mxu0
      %vm747 = vcmask 130048
      %v749 = vsel %vm747, %v358, 0
      %v752 = vsel %vm747, %v359, 0
      %v755 = vsel %vm747, %v360, 0
      %v758 = vsel %vm747, %v361, 0
      %v761 = vsel %vm747, %v362, 0
      %v764 = vsel %vm747, %v363, 0
      %v767 = vsel %vm747, %v364, 0
      %v770 = vsel %vm747, %v365, 0
      %v773 = vsel %vm747, %v366, 0
      %v776 = vsel %vm747, %v367, 0
      %v779 = vsel %vm747, %v368, 0
      %v782 = vsel %vm747, %v369, 0
      %v785 = vsel %vm747, %v370, 0
      %v788 = vsel %vm747, %v371, 0
      %v791 = vsel %vm747, %v372, 0
      %v794 = vsel %vm747, %v373, 0
      %v797 = vsel %vm747, %v374, 0
      %v800 = vsel %vm747, %v375, 0
      %v803 = vsel %vm747, %v376, 0
      %v806 = vsel %vm747, %v377, 0
      %v809 = vsel %vm747, %v378, 0
      %v812 = vsel %vm747, %v379, 0
      %v815 = vsel %vm747, %v380, 0
      %v818 = vsel %vm747, %v381, 0
      %v821 = vsel %vm747, %v382, 0
      %v824 = vsel %vm747, %v383, 0
      %v827 = vsel %vm747, %v384, 0
      %v830 = vsel %vm747, %v385, 0
      %v833 = vsel %vm747, %v386, 0
      %v836 = vsel %vm747, %v387, 0
      %v839 = vsel %vm747, %v388, 0
      %v842 = vsel %vm747, %v389, 0
      %844 = vmatprep.subr.mxu0 0.0
      %845 = vmatpush1.msra.mxu0 0.0
      %846 = vmatprep.subr.mxu0 0.0
      %847 = vmatpush1.msra.mxu0 0.0
      %848 = vmatprep.subr.mxu0 0.0
      %849 = vmatpush1.msra.mxu0 0.0
      %850 = vmatprep.subr.mxu0 0.0
      %851 = vmatpush1.msra.mxu0 0.0
      %852 = vmatprep.subr.mxu0 0.0
      %853 = vmatpush1.msra.mxu0 0.0
      %854 = vmatprep.subr.mxu0 0.0
      %855 = vmatpush1.msra.mxu0 0.0
      %856 = vmatprep.subr.mxu0 0.0
      %857 = vmatpush1.msra.mxu0 0.0
      %858 = vmatprep.subr.mxu0 0.0
      %859 = vmatpush1.msra.mxu0 0.0
      %860 = vmatprep.subr.mxu0 0.0
      %861 = vmatpush1.msra.mxu0 0.0
      %862 = vmatprep.subr.mxu0 0.0
      %863 = vmatpush1.msra.mxu0 0.0
      %864 = vmatprep.subr.mxu0 0.0
      %865 = vmatpush1.msra.mxu0 0.0
      %866 = vmatprep.subr.mxu0 0.0
      %867 = vmatpush1.msra.mxu0 0.0
      %868 = vmatprep.subr.mxu0 0.0
      %869 = vmatpush1.msra.mxu0 0.0
      %870 = vmatprep.subr.mxu0 0.0
      %871 = vmatpush1.msra.mxu0 0.0
      %872 = vmatprep.subr.mxu0 0.0
      %873 = vmatpush1.msra.mxu0 %v391
      %874 = vmatprep.subr.mxu0 0.0
      %875 = vmatpush1.msra.mxu0 %v390
      %876 = vmatprep.subr.mxu0 0.0
      %877 = vmatpush2.msra.mxu0 0.0
      %878 = vmatprep.subr.mxu0 0.0
      %879 = vmatpush2.msra.mxu0 0.0
      %880 = vmatprep.subr.mxu0 0.0
      %881 = vmatpush2.msra.mxu0 0.0
      %882 = vmatprep.subr.mxu0 0.0
      %883 = vmatpush2.msra.mxu0 0.0
      %884 = vmatprep.subr.mxu0 0.0
      %885 = vmatpush2.msra.mxu0 0.0
      %886 = vmatprep.subr.mxu0 0.0
      %887 = vmatpush2.msra.mxu0 0.0
      %888 = vmatprep.subr.mxu0 0.0
      %889 = vmatpush2.msra.mxu0 0.0
      %890 = vmatprep.subr.mxu0 0.0
      %891 = vmatpush2.msra.mxu0 0.0
      %892 = vmatprep.subr.mxu0 0.0
      %893 = vmatpush2.msra.mxu0 0.0
      %894 = vmatprep.subr.mxu0 0.0
      %895 = vmatpush2.msra.mxu0 0.0
      %896 = vmatprep.subr.mxu0 0.0
      %897 = vmatpush2.msra.mxu0 0.0
      %898 = vmatprep.subr.mxu0 0.0
      %899 = vmatpush2.msra.mxu0 0.0
      %900 = vmatprep.subr.mxu0 0.0
      %901 = vmatpush2.msra.mxu0 0.0
      %902 = vmatprep.subr.mxu0 0.0
      %903 = vmatpush2.msra.mxu0 0.0
      %904 = vmatprep.subr.mxu0 0.0
      %905 = vmatpush2.msra.mxu0 0.0
      %906 = vmatprep.subr.mxu0 0.0
      %907 = vmatpush2.msra.mxu0 0.0
      %908 = vmatprep.mubr.f32.mxu0 0.0
      %909 = vmatmul.mubr.f32.gmra.mxu0 %v749
      %v910 = vpop.f32.mrf.mxu0
      %v911 = vadd.f32 %v589, %v910
      %v912 = vpop.f32.mrf.mxu0
      %913 = vmatprep.mubr.f32.mxu0 0.0
      %914 = vmatmul.mubr.f32.gmra.mxu0 %v752
      %v915 = vpop.f32.mrf.mxu0
      %v916 = vadd.f32 %v594, %v915
      %v917 = vpop.f32.mrf.mxu0
      %918 = vmatprep.mubr.f32.mxu0 0.0
      %919 = vmatmul.mubr.f32.gmra.mxu0 %v755
      %v920 = vpop.f32.mrf.mxu0
      %v921 = vadd.f32 %v599, %v920
      %v922 = vpop.f32.mrf.mxu0
      %923 = vmatprep.mubr.f32.mxu0 0.0
      %924 = vmatmul.mubr.f32.gmra.mxu0 %v758
      %v925 = vpop.f32.mrf.mxu0
      %v926 = vadd.f32 %v604, %v925
      %v927 = vpop.f32.mrf.mxu0
      %928 = vmatprep.mubr.f32.mxu0 0.0
      %929 = vmatmul.mubr.f32.gmra.mxu0 %v761
      %v930 = vpop.f32.mrf.mxu0
      %v931 = vadd.f32 %v609, %v930
      %v932 = vpop.f32.mrf.mxu0
      %933 = vmatprep.mubr.f32.mxu0 0.0
      %934 = vmatmul.mubr.f32.gmra.mxu0 %v764
      %v935 = vpop.f32.mrf.mxu0
      %v936 = vadd.f32 %v614, %v935
      %v937 = vpop.f32.mrf.mxu0
      %938 = vmatprep.mubr.f32.mxu0 0.0
      %939 = vmatmul.mubr.f32.gmra.mxu0 %v767
      %v940 = vpop.f32.mrf.mxu0
      %v941 = vadd.f32 %v619, %v940
      %v942 = vpop.f32.mrf.mxu0
      %943 = vmatprep.mubr.f32.mxu0 0.0
      %944 = vmatmul.mubr.f32.gmra.mxu0 %v770
      %v945 = vpop.f32.mrf.mxu0
      %v946 = vadd.f32 %v624, %v945
      %v947 = vpop.f32.mrf.mxu0
      %948 = vmatprep.mubr.f32.mxu0 0.0
      %949 = vmatmul.mubr.f32.gmra.mxu0 %v773
      %v950 = vpop.f32.mrf.mxu0
      %v951 = vadd.f32 %v629, %v950
      %v952 = vpop.f32.mrf.mxu0
      %953 = vmatprep.mubr.f32.mxu0 0.0
      %954 = vmatmul.mubr.f32.gmra.mxu0 %v776
      %v955 = vpop.f32.mrf.mxu0
      %v956 = vadd.f32 %v634, %v955
      %v957 = vpop.f32.mrf.mxu0
      %958 = vmatprep.mubr.f32.mxu0 0.0
      %959 = vmatmul.mubr.f32.gmra.mxu0 %v779
      %v960 = vpop.f32.mrf.mxu0
      %v961 = vadd.f32 %v639, %v960
      %v962 = vpop.f32.mrf.mxu0
      %963 = vmatprep.mubr.f32.mxu0 0.0
      %964 = vmatmul.mubr.f32.gmra.mxu0 %v782
      %v965 = vpop.f32.mrf.mxu0
      %v966 = vadd.f32 %v644, %v965
      %v967 = vpop.f32.mrf.mxu0
      %968 = vmatprep.mubr.f32.mxu0 0.0
      %969 = vmatmul.mubr.f32.gmra.mxu0 %v785
      %v970 = vpop.f32.mrf.mxu0
      %v971 = vadd.f32 %v649, %v970
      %v972 = vpop.f32.mrf.mxu0
      %973 = vmatprep.mubr.f32.mxu0 0.0
      %974 = vmatmul.mubr.f32.gmra.mxu0 %v788
      %v975 = vpop.f32.mrf.mxu0
      %v976 = vadd.f32 %v654, %v975
      %v977 = vpop.f32.mrf.mxu0
      %978 = vmatprep.mubr.f32.mxu0 0.0
      %979 = vmatmul.mubr.f32.gmra.mxu0 %v791
      %v980 = vpop.f32.mrf.mxu0
      %v981 = vadd.f32 %v659, %v980
      %v982 = vpop.f32.mrf.mxu0
      %983 = vmatprep.mubr.f32.mxu0 0.0
      %984 = vmatmul.mubr.f32.gmra.mxu0 %v794
      %v985 = vpop.f32.mrf.mxu0
      %v986 = vadd.f32 %v664, %v985
      %v987 = vpop.f32.mrf.mxu0
      %988 = vmatprep.mubr.f32.mxu0 0.0
      %989 = vmatmul.mubr.f32.gmra.mxu0 %v797
      %v990 = vpop.f32.mrf.mxu0
      %v991 = vadd.f32 %v669, %v990
      %v992 = vpop.f32.mrf.mxu0
      %993 = vmatprep.mubr.f32.mxu0 0.0
      %994 = vmatmul.mubr.f32.gmra.mxu0 %v800
      %v995 = vpop.f32.mrf.mxu0
      %v996 = vadd.f32 %v674, %v995
      %v997 = vpop.f32.mrf.mxu0
      %998 = vmatprep.mubr.f32.mxu0 0.0
      %999 = vmatmul.mubr.f32.gmra.mxu0 %v803
      %v1000 = vpop.f32.mrf.mxu0
      %v1001 = vadd.f32 %v679, %v1000
      %v1002 = vpop.f32.mrf.mxu0
      %1003 = vmatprep.mubr.f32.mxu0 0.0
      %1004 = vmatmul.mubr.f32.gmra.mxu0 %v806
      %v1005 = vpop.f32.mrf.mxu0
      %v1006 = vadd.f32 %v684, %v1005
      %v1007 = vpop.f32.mrf.mxu0
      %1008 = vmatprep.mubr.f32.mxu0 0.0
      %1009 = vmatmul.mubr.f32.gmra.mxu0 %v809
      %v1010 = vpop.f32.mrf.mxu0
      %v1011 = vadd.f32 %v689, %v1010
      %v1012 = vpop.f32.mrf.mxu0
      %1013 = vmatprep.mubr.f32.mxu0 0.0
      %1014 = vmatmul.mubr.f32.gmra.mxu0 %v812
      %v1015 = vpop.f32.mrf.mxu0
      %v1016 = vadd.f32 %v694, %v1015
      %v1017 = vpop.f32.mrf.mxu0
      %1018 = vmatprep.mubr.f32.mxu0 0.0
      %1019 = vmatmul.mubr.f32.gmra.mxu0 %v815
      %v1020 = vpop.f32.mrf.mxu0
      %v1021 = vadd.f32 %v699, %v1020
      %v1022 = vpop.f32.mrf.mxu0
      %1023 = vmatprep.mubr.f32.mxu0 0.0
      %1024 = vmatmul.mubr.f32.gmra.mxu0 %v818
      %v1025 = vpop.f32.mrf.mxu0
      %v1026 = vadd.f32 %v704, %v1025
      %v1027 = vpop.f32.mrf.mxu0
      %1028 = vmatprep.mubr.f32.mxu0 0.0
      %1029 = vmatmul.mubr.f32.gmra.mxu0 %v821
      %v1030 = vpop.f32.mrf.mxu0
      %v1031 = vadd.f32 %v709, %v1030
      %v1032 = vpop.f32.mrf.mxu0
      %1033 = vmatprep.mubr.f32.mxu0 0.0
      %1034 = vmatmul.mubr.f32.gmra.mxu0 %v824
      %v1035 = vpop.f32.mrf.mxu0
      %v1036 = vadd.f32 %v714, %v1035
      %v1037 = vpop.f32.mrf.mxu0
      %1038 = vmatprep.mubr.f32.mxu0 0.0
      %1039 = vmatmul.mubr.f32.gmra.mxu0 %v827
      %v1040 = vpop.f32.mrf.mxu0
      %v1041 = vadd.f32 %v719, %v1040
      %v1042 = vpop.f32.mrf.mxu0
      %1043 = vmatprep.mubr.f32.mxu0 0.0
      %1044 = vmatmul.mubr.f32.gmra.mxu0 %v830
      %v1045 = vpop.f32.mrf.mxu0
      %v1046 = vadd.f32 %v724, %v1045
      %v1047 = vpop.f32.mrf.mxu0
      %1048 = vmatprep.mubr.f32.mxu0 0.0
      %1049 = vmatmul.mubr.f32.gmra.mxu0 %v833
      %v1050 = vpop.f32.mrf.mxu0
      %v1051 = vadd.f32 %v729, %v1050
      %v1052 = vpop.f32.mrf.mxu0
      %1053 = vmatprep.mubr.f32.mxu0 0.0
      %1054 = vmatmul.mubr.f32.gmra.mxu0 %v836
      %v1055 = vpop.f32.mrf.mxu0
      %v1056 = vadd.f32 %v734, %v1055
      %v1057 = vpop.f32.mrf.mxu0
      %1058 = vmatprep.mubr.f32.mxu0 0.0
      %1059 = vmatmul.mubr.f32.gmra.mxu0 %v839
      %v1060 = vpop.f32.mrf.mxu0
      %v1061 = vadd.f32 %v739, %v1060
      %v1062 = vpop.f32.mrf.mxu0
      %1063 = vmatprep.mubr.f32.mxu0 0.0
      %1064 = vmatmul.mubr.f32.gmra.mxu0 %v842
      %v1065 = vpop.f32.mrf.mxu0
      %v1066 = vadd.f32 %v744, %v1065
      %v1067 = vpop.f32.mrf.mxu0
      %1068 = vdwg.mxu0
      %v1069 = vld [vmem:[%s4] sm:$0x1]
      %v1071 = vlaneseq
      %v1072 = vshrl.u32 %v1071, 7
      %v1073 = vsub.s32 0, %v1072
      %v1074 = vrot.slane %v1069, %v1073
      %v1076 = vadd.f32 %v911, %v1074
      %v1077 = vadd.f32 %v916, %v1074
      %v1078 = vadd.f32 %v921, %v1074
      %v1079 = vadd.f32 %v926, %v1074
      %v1080 = vadd.f32 %v931, %v1074
      %v1081 = vadd.f32 %v936, %v1074
      %v1082 = vadd.f32 %v941, %v1074
      %v1083 = vadd.f32 %v946, %v1074
      %v1084 = vadd.f32 %v951, %v1074
      %v1085 = vadd.f32 %v956, %v1074
      %v1086 = vadd.f32 %v961, %v1074
      %v1087 = vadd.f32 %v966, %v1074
      %v1088 = vadd.f32 %v971, %v1074
      %v1089 = vadd.f32 %v976, %v1074
      %v1090 = vadd.f32 %v981, %v1074
      %v1091 = vadd.f32 %v986, %v1074
      %v1092 = vadd.f32 %v991, %v1074
      %v1093 = vadd.f32 %v996, %v1074
      %v1094 = vadd.f32 %v1001, %v1074
      %v1095 = vadd.f32 %v1006, %v1074
      %v1096 = vadd.f32 %v1011, %v1074
      %v1097 = vadd.f32 %v1016, %v1074
      %v1098 = vadd.f32 %v1021, %v1074
      %v1099 = vadd.f32 %v1026, %v1074
      %v1100 = vadd.f32 %v1031, %v1074
      %v1101 = vadd.f32 %v1036, %v1074
      %v1102 = vadd.f32 %v1041, %v1074
      %v1103 = vadd.f32 %v1046, %v1074
      %v1104 = vadd.f32 %v1051, %v1074
      %v1105 = vadd.f32 %v1056, %v1074
      %v1106 = vadd.f32 %v1061, %v1074
      %v1107 = vadd.f32 %v1066, %v1074
      %v1108 = vmax.f32 %v1076, 0.0
      %v1109 = vmax.f32 %v1077, 0.0
      %v1110 = vmax.f32 %v1078, 0.0
      %v1111 = vmax.f32 %v1079, 0.0
      %v1112 = vmax.f32 %v1080, 0.0
      %v1113 = vmax.f32 %v1081, 0.0
      %v1114 = vmax.f32 %v1082, 0.0
      %v1115 = vmax.f32 %v1083, 0.0
      %v1116 = vmax.f32 %v1084, 0.0
      %v1117 = vmax.f32 %v1085, 0.0
      %v1118 = vmax.f32 %v1086, 0.0
      %v1119 = vmax.f32 %v1087, 0.0
      %v1120 = vmax.f32 %v1088, 0.0
      %v1121 = vmax.f32 %v1089, 0.0
      %v1122 = vmax.f32 %v1090, 0.0
      %v1123 = vmax.f32 %v1091, 0.0
      %v1124 = vmax.f32 %v1092, 0.0
      %v1125 = vmax.f32 %v1093, 0.0
      %v1126 = vmax.f32 %v1094, 0.0
      %v1127 = vmax.f32 %v1095, 0.0
      %v1128 = vmax.f32 %v1096, 0.0
      %v1129 = vmax.f32 %v1097, 0.0
      %v1130 = vmax.f32 %v1098, 0.0
      %v1131 = vmax.f32 %v1099, 0.0
      %v1132 = vmax.f32 %v1100, 0.0
      %v1133 = vmax.f32 %v1101, 0.0
      %v1134 = vmax.f32 %v1102, 0.0
      %v1135 = vmax.f32 %v1103, 0.0
      %v1136 = vmax.f32 %v1104, 0.0
      %v1137 = vmax.f32 %v1105, 0.0
      %v1138 = vmax.f32 %v1106, 0.0
      %v1139 = vmax.f32 %v1107, 0.0
      %v1140 = vld [vmem:[%s5] sm:$0xff]
      %v1141 = vld [vmem:[%s5 + $0x8] sm:$0xff]
      %v1142 = vld [vmem:[%s5 + $0x10] sm:$0xff]
      %v1143 = vld [vmem:[%s5 + $0x18] sm:$0xff]
      %v1144 = vld [vmem:[%s6] sm:$0x1]
      %v1146 = vlaneseq
      %v1147 = vshrl.u32 %v1146, 7
      %v1148 = vsub.s32 0, %v1147
      %v1149 = vrot.slane %v1144, %v1148
      %vm1151 = vcmask 261120
      %v1153 = vsel %vm1151, %v1108, 0
      %v1156 = vsel %vm1151, %v1109, 0
      %v1159 = vsel %vm1151, %v1110, 0
      %v1162 = vsel %vm1151, %v1111, 0
      %v1165 = vsel %vm1151, %v1112, 0
      %v1168 = vsel %vm1151, %v1113, 0
      %v1171 = vsel %vm1151, %v1114, 0
      %v1174 = vsel %vm1151, %v1115, 0
      %v1177 = vsel %vm1151, %v1116, 0
      %v1180 = vsel %vm1151, %v1117, 0
      %v1183 = vsel %vm1151, %v1118, 0
      %v1186 = vsel %vm1151, %v1119, 0
      %v1189 = vsel %vm1151, %v1120, 0
      %v1192 = vsel %vm1151, %v1121, 0
      %v1195 = vsel %vm1151, %v1122, 0
      %v1198 = vsel %vm1151, %v1123, 0
      %v1201 = vsel %vm1151, %v1124, 0
      %v1204 = vsel %vm1151, %v1125, 0
      %v1207 = vsel %vm1151, %v1126, 0
      %v1210 = vsel %vm1151, %v1127, 0
      %v1213 = vsel %vm1151, %v1128, 0
      %v1216 = vsel %vm1151, %v1129, 0
      %v1219 = vsel %vm1151, %v1130, 0
      %v1222 = vsel %vm1151, %v1131, 0
      %v1225 = vsel %vm1151, %v1132, 0
      %v1228 = vsel %vm1151, %v1133, 0
      %v1231 = vsel %vm1151, %v1134, 0
      %v1234 = vsel %vm1151, %v1135, 0
      %v1237 = vsel %vm1151, %v1136, 0
      %v1240 = vsel %vm1151, %v1137, 0
      %v1243 = vsel %vm1151, %v1138, 0
      %v1246 = vsel %vm1151, %v1139, 0
      %1248 = vmatprep.subr.mxu0 0.0
      %1249 = vmatpush1.msra.mxu0 0.0
      %1250 = vmatprep.subr.mxu0 0.0
      %1251 = vmatpush1.msra.mxu0 0.0
      %1252 = vmatprep.subr.mxu0 0.0
      %1253 = vmatpush1.msra.mxu0 0.0
      %1254 = vmatprep.subr.mxu0 0.0
      %1255 = vmatpush1.msra.mxu0 0.0
      %1256 = vmatprep.subr.mxu0 0.0
      %1257 = vmatpush1.msra.mxu0 0.0
      %1258 = vmatprep.subr.mxu0 0.0
      %1259 = vmatpush1.msra.mxu0 0.0
      %1260 = vmatprep.subr.mxu0 0.0
      %1261 = vmatpush1.msra.mxu0 0.0
      %1262 = vmatprep.subr.mxu0 0.0
      %1263 = vmatpush1.msra.mxu0 0.0
      %1264 = vmatprep.subr.mxu0 0.0
      %1265 = vmatpush1.msra.mxu0 0.0
      %1266 = vmatprep.subr.mxu0 0.0
      %1267 = vmatpush1.msra.mxu0 0.0
      %1268 = vmatprep.subr.mxu0 0.0
      %1269 = vmatpush1.msra.mxu0 0.0
      %1270 = vmatprep.subr.mxu0 0.0
      %1271 = vmatpush1.msra.mxu0 0.0
      %1272 = vmatprep.subr.mxu0 0.0
      %1273 = vmatpush1.msra.mxu0 %v1143
      %1274 = vmatprep.subr.mxu0 0.0
      %1275 = vmatpush1.msra.mxu0 %v1142
      %1276 = vmatprep.subr.mxu0 0.0
      %1277 = vmatpush1.msra.mxu0 %v1141
      %1278 = vmatprep.subr.mxu0 0.0
      %1279 = vmatpush1.msra.mxu0 %v1140
      %1280 = vmatprep.subr.mxu0 0.0
      %1281 = vmatpush2.msra.mxu0 0.0
      %1282 = vmatprep.subr.mxu0 0.0
      %1283 = vmatpush2.msra.mxu0 0.0
      %1284 = vmatprep.subr.mxu0 0.0
      %1285 = vmatpush2.msra.mxu0 0.0
      %1286 = vmatprep.subr.mxu0 0.0
      %1287 = vmatpush2.msra.mxu0 0.0
      %1288 = vmatprep.subr.mxu0 0.0
      %1289 = vmatpush2.msra.mxu0 0.0
      %1290 = vmatprep.subr.mxu0 0.0
      %1291 = vmatpush2.msra.mxu0 0.0
      %1292 = vmatprep.subr.mxu0 0.0
      %1293 = vmatpush2.msra.mxu0 0.0
      %1294 = vmatprep.subr.mxu0 0.0
      %1295 = vmatpush2.msra.mxu0 0.0
      %1296 = vmatprep.subr.mxu0 0.0
      %1297 = vmatpush2.msra.mxu0 0.0
      %1298 = vmatprep.subr.mxu0 0.0
      %1299 = vmatpush2.msra.mxu0 0.0
      %1300 = vmatprep.subr.mxu0 0.0
      %1301 = vmatpush2.msra.mxu0 0.0
      %1302 = vmatprep.subr.mxu0 0.0
      %1303 = vmatpush2.msra.mxu0 0.0
      %1304 = vmatprep.subr.mxu0 0.0
      %1305 = vmatpush2.msra.mxu0 0.0
      %1306 = vmatprep.subr.mxu0 0.0
      %1307 = vmatpush2.msra.mxu0 0.0
      %1308 = vmatprep.subr.mxu0 0.0
      %1309 = vmatpush2.msra.mxu0 0.0
      %1310 = vmatprep.subr.mxu0 0.0
      %1311 = vmatpush2.msra.mxu0 0.0
      %1312 = vmatprep.mubr.f32.mxu0 0.0
      %1313 = vmatmul.mubr.f32.gmra.mxu0 %v1153
      %v1314 = vpop.f32.mrf.mxu0
      %v1315 = vadd.f32 %v1149, %v1314
      %v1316 = vpop.f32.mrf.mxu0
      %1317 = vmatprep.mubr.f32.mxu0 0.0
      %1318 = vmatmul.mubr.f32.gmra.mxu0 %v1156
      %v1319 = vpop.f32.mrf.mxu0
      %v1320 = vadd.f32 %v1149, %v1319
      %v1321 = vpop.f32.mrf.mxu0
      %1322 = vmatprep.mubr.f32.mxu0 0.0
      %1323 = vmatmul.mubr.f32.gmra.mxu0 %v1159
      %v1324 = vpop.f32.mrf.mxu0
      %v1325 = vadd.f32 %v1149, %v1324
      %v1326 = vpop.f32.mrf.mxu0
      %1327 = vmatprep.mubr.f32.mxu0 0.0
      %1328 = vmatmul.mubr.f32.gmra.mxu0 %v1162
      %v1329 = vpop.f32.mrf.mxu0
      %v1330 = vadd.f32 %v1149, %v1329
      %v1331 = vpop.f32.mrf.mxu0
      %1332 = vmatprep.mubr.f32.mxu0 0.0
      %1333 = vmatmul.mubr.f32.gmra.mxu0 %v1165
      %v1334 = vpop.f32.mrf.mxu0
      %v1335 = vadd.f32 %v1149, %v1334
      %v1336 = vpop.f32.mrf.mxu0
      %1337 = vmatprep.mubr.f32.mxu0 0.0
      %1338 = vmatmul.mubr.f32.gmra.mxu0 %v1168
      %v1339 = vpop.f32.mrf.mxu0
      %v1340 = vadd.f32 %v1149, %v1339
      %v1341 = vpop.f32.mrf.mxu0
      %1342 = vmatprep.mubr.f32.mxu0 0.0
      %1343 = vmatmul.mubr.f32.gmra.mxu0 %v1171
      %v1344 = vpop.f32.mrf.mxu0
      %v1345 = vadd.f32 %v1149, %v1344
      %v1346 = vpop.f32.mrf.mxu0
      %1347 = vmatprep.mubr.f32.mxu0 0.0
      %1348 = vmatmul.mubr.f32.gmra.mxu0 %v1174
      %v1349 = vpop.f32.mrf.mxu0
      %v1350 = vadd.f32 %v1149, %v1349
      %v1351 = vpop.f32.mrf.mxu0
      %1352 = vmatprep.mubr.f32.mxu0 0.0
      %1353 = vmatmul.mubr.f32.gmra.mxu0 %v1177
      %v1354 = vpop.f32.mrf.mxu0
      %v1355 = vadd.f32 %v1149, %v1354
      %v1356 = vpop.f32.mrf.mxu0
      %1357 = vmatprep.mubr.f32.mxu0 0.0
      %1358 = vmatmul.mubr.f32.gmra.mxu0 %v1180
      %v1359 = vpop.f32.mrf.mxu0
      %v1360 = vadd.f32 %v1149, %v1359
      %v1361 = vpop.f32.mrf.mxu0
      %1362 = vmatprep.mubr.f32.mxu0 0.0
      %1363 = vmatmul.mubr.f32.gmra.mxu0 %v1183
      %v1364 = vpop.f32.mrf.mxu0
      %v1365 = vadd.f32 %v1149, %v1364
      %v1366 = vpop.f32.mrf.mxu0
      %1367 = vmatprep.mubr.f32.mxu0 0.0
      %1368 = vmatmul.mubr.f32.gmra.mxu0 %v1186
      %v1369 = vpop.f32.mrf.mxu0
      %v1370 = vadd.f32 %v1149, %v1369
      %v1371 = vpop.f32.mrf.mxu0
      %1372 = vmatprep.mubr.f32.mxu0 0.0
      %1373 = vmatmul.mubr.f32.gmra.mxu0 %v1189
      %v1374 = vpop.f32.mrf.mxu0
      %v1375 = vadd.f32 %v1149, %v1374
      %v1376 = vpop.f32.mrf.mxu0
      %1377 = vmatprep.mubr.f32.mxu0 0.0
      %1378 = vmatmul.mubr.f32.gmra.mxu0 %v1192
      %v1379 = vpop.f32.mrf.mxu0
      %v1380 = vadd.f32 %v1149, %v1379
      %v1381 = vpop.f32.mrf.mxu0
      %1382 = vmatprep.mubr.f32.mxu0 0.0
      %1383 = vmatmul.mubr.f32.gmra.mxu0 %v1195
      %v1384 = vpop.f32.mrf.mxu0
      %v1385 = vadd.f32 %v1149, %v1384
      %v1386 = vpop.f32.mrf.mxu0
      %1387 = vmatprep.mubr.f32.mxu0 0.0
      %1388 = vmatmul.mubr.f32.gmra.mxu0 %v1198
      %v1389 = vpop.f32.mrf.mxu0
      %v1390 = vadd.f32 %v1149, %v1389
      %v1391 = vpop.f32.mrf.mxu0
      %1392 = vmatprep.mubr.f32.mxu0 0.0
      %1393 = vmatmul.mubr.f32.gmra.mxu0 %v1201
      %v1394 = vpop.f32.mrf.mxu0
      %v1395 = vadd.f32 %v1149, %v1394
      %v1396 = vpop.f32.mrf.mxu0
      %1397 = vmatprep.mubr.f32.mxu0 0.0
      %1398 = vmatmul.mubr.f32.gmra.mxu0 %v1204
      %v1399 = vpop.f32.mrf.mxu0
      %v1400 = vadd.f32 %v1149, %v1399
      %v1401 = vpop.f32.mrf.mxu0
      %1402 = vmatprep.mubr.f32.mxu0 0.0
      %1403 = vmatmul.mubr.f32.gmra.mxu0 %v1207
      %v1404 = vpop.f32.mrf.mxu0
      %v1405 = vadd.f32 %v1149, %v1404
      %v1406 = vpop.f32.mrf.mxu0
      %1407 = vmatprep.mubr.f32.mxu0 0.0
      %1408 = vmatmul.mubr.f32.gmra.mxu0 %v1210
      %v1409 = vpop.f32.mrf.mxu0
      %v1410 = vadd.f32 %v1149, %v1409
      %v1411 = vpop.f32.mrf.mxu0
      %1412 = vmatprep.mubr.f32.mxu0 0.0
      %1413 = vmatmul.mubr.f32.gmra.mxu0 %v1213
      %v1414 = vpop.f32.mrf.mxu0
      %v1415 = vadd.f32 %v1149, %v1414
      %v1416 = vpop.f32.mrf.mxu0
      %1417 = vmatprep.mubr.f32.mxu0 0.0
      %1418 = vmatmul.mubr.f32.gmra.mxu0 %v1216
      %v1419 = vpop.f32.mrf.mxu0
      %v1420 = vadd.f32 %v1149, %v1419
      %v1421 = vpop.f32.mrf.mxu0
      %1422 = vmatprep.mubr.f32.mxu0 0.0
      %1423 = vmatmul.mubr.f32.gmra.mxu0 %v1219
      %v1424 = vpop.f32.mrf.mxu0
      %v1425 = vadd.f32 %v1149, %v1424
      %v1426 = vpop.f32.mrf.mxu0
      %1427 = vmatprep.mubr.f32.mxu0 0.0
      %1428 = vmatmul.mubr.f32.gmra.mxu0 %v1222
      %v1429 = vpop.f32.mrf.mxu0
      %v1430 = vadd.f32 %v1149, %v1429
      %v1431 = vpop.f32.mrf.mxu0
      %1432 = vmatprep.mubr.f32.mxu0 0.0
      %1433 = vmatmul.mubr.f32.gmra.mxu0 %v1225
      %v1434 = vpop.f32.mrf.mxu0
      %v1435 = vadd.f32 %v1149, %v1434
      %v1436 = vpop.f32.mrf.mxu0
      %1437 = vmatprep.mubr.f32.mxu0 0.0
      %1438 = vmatmul.mubr.f32.gmra.mxu0 %v1228
      %v1439 = vpop.f32.mrf.mxu0
      %v1440 = vadd.f32 %v1149, %v1439
      %v1441 = vpop.f32.mrf.mxu0
      %1442 = vmatprep.mubr.f32.mxu0 0.0
      %1443 = vmatmul.mubr.f32.gmra.mxu0 %v1231
      %v1444 = vpop.f32.mrf.mxu0
      %v1445 = vadd.f32 %v1149, %v1444
      %v1446 = vpop.f32.mrf.mxu0
      %1447 = vmatprep.mubr.f32.mxu0 0.0
      %1448 = vmatmul.mubr.f32.gmra.mxu0 %v1234
      %v1449 = vpop.f32.mrf.mxu0
      %v1450 = vadd.f32 %v1149, %v1449
      %v1451 = vpop.f32.mrf.mxu0
      %1452 = vmatprep.mubr.f32.mxu0 0.0
      %1453 = vmatmul.mubr.f32.gmra.mxu0 %v1237
      %v1454 = vpop.f32.mrf.mxu0
      %v1455 = vadd.f32 %v1149, %v1454
      %v1456 = vpop.f32.mrf.mxu0
      %1457 = vmatprep.mubr.f32.mxu0 0.0
      %1458 = vmatmul.mubr.f32.gmra.mxu0 %v1240
      %v1459 = vpop.f32.mrf.mxu0
      %v1460 = vadd.f32 %v1149, %v1459
      %v1461 = vpop.f32.mrf.mxu0
      %1462 = vmatprep.mubr.f32.mxu0 0.0
      %1463 = vmatmul.mubr.f32.gmra.mxu0 %v1243
      %v1464 = vpop.f32.mrf.mxu0
      %v1465 = vadd.f32 %v1149, %v1464
      %v1466 = vpop.f32.mrf.mxu0
      %1467 = vmatprep.mubr.f32.mxu0 0.0
      %1468 = vmatmul.mubr.f32.gmra.mxu0 %v1246
      %v1469 = vpop.f32.mrf.mxu0
      %v1470 = vadd.f32 %v1149, %v1469
      %v1471 = vpop.f32.mrf.mxu0
      %1472 = vdwg.mxu0
      %v1473 = vmax.f32 %v1315, 0.0
      %v1474 = vmax.f32 %v1320, 0.0
      %v1475 = vmax.f32 %v1325, 0.0
      %v1476 = vmax.f32 %v1330, 0.0
      %v1477 = vmax.f32 %v1335, 0.0
      %v1478 = vmax.f32 %v1340, 0.0
      %v1479 = vmax.f32 %v1345, 0.0
      %v1480 = vmax.f32 %v1350, 0.0
      %v1481 = vmax.f32 %v1355, 0.0
      %v1482 = vmax.f32 %v1360, 0.0
      %v1483 = vmax.f32 %v1365, 0.0
      %v1484 = vmax.f32 %v1370, 0.0
      %v1485 = vmax.f32 %v1375, 0.0
      %v1486 = vmax.f32 %v1380, 0.0
      %v1487 = vmax.f32 %v1385, 0.0
      %v1488 = vmax.f32 %v1390, 0.0
      %v1489 = vmax.f32 %v1395, 0.0
      %v1490 = vmax.f32 %v1400, 0.0
      %v1491 = vmax.f32 %v1405, 0.0
      %v1492 = vmax.f32 %v1410, 0.0
      %v1493 = vmax.f32 %v1415, 0.0
      %v1494 = vmax.f32 %v1420, 0.0
      %v1495 = vmax.f32 %v1425, 0.0
      %v1496 = vmax.f32 %v1430, 0.0
      %v1497 = vmax.f32 %v1435, 0.0
      %v1498 = vmax.f32 %v1440, 0.0
      %v1499 = vmax.f32 %v1445, 0.0
      %v1500 = vmax.f32 %v1450, 0.0
      %v1501 = vmax.f32 %v1455, 0.0
      %v1502 = vmax.f32 %v1460, 0.0
      %v1503 = vmax.f32 %v1465, 0.0
      %v1504 = vmax.f32 %v1470, 0.0
      %v1505 = vld [vmem:[%s7] sm:$0xff]
      %v1507 = vsel %vm1151, %v1505, 0
      %v1510 = vsel %vm1151, %v1473, 0
      %v1513 = vsel %vm1151, %v1474, 0
      %v1516 = vsel %vm1151, %v1475, 0
      %v1519 = vsel %vm1151, %v1476, 0
      %v1522 = vsel %vm1151, %v1477, 0
      %v1525 = vsel %vm1151, %v1478, 0
      %v1528 = vsel %vm1151, %v1479, 0
      %v1531 = vsel %vm1151, %v1480, 0
      %v1534 = vsel %vm1151, %v1481, 0
      %v1537 = vsel %vm1151, %v1482, 0
      %v1540 = vsel %vm1151, %v1483, 0
      %v1543 = vsel %vm1151, %v1484, 0
      %v1546 = vsel %vm1151, %v1485, 0
      %v1549 = vsel %vm1151, %v1486, 0
      %v1552 = vsel %vm1151, %v1487, 0
      %v1555 = vsel %vm1151, %v1488, 0
      %v1558 = vsel %vm1151, %v1489, 0
      %v1561 = vsel %vm1151, %v1490, 0
      %v1564 = vsel %vm1151, %v1491, 0
      %v1567 = vsel %vm1151, %v1492, 0
      %v1570 = vsel %vm1151, %v1493, 0
      %v1573 = vsel %vm1151, %v1494, 0
      %v1576 = vsel %vm1151, %v1495, 0
      %v1579 = vsel %vm1151, %v1496, 0
      %v1582 = vsel %vm1151, %v1497, 0
      %v1585 = vsel %vm1151, %v1498, 0
      %v1588 = vsel %vm1151, %v1499, 0
      %v1591 = vsel %vm1151, %v1500, 0
      %v1594 = vsel %vm1151, %v1501, 0
      %v1597 = vsel %vm1151, %v1502, 0
      %v1600 = vsel %vm1151, %v1503, 0
      %v1603 = vsel %vm1151, %v1504, 0
      %1605 = vmatprep.subr.mxu0 0.0
      %1606 = vmatpush1.xpose.msra.mxu0 %v1555
      %1607 = vmatprep.subr.mxu0 0.0
      %1608 = vmatpush1.xpose.msra.mxu0 %v1552
      %1609 = vmatprep.subr.mxu0 0.0
      %1610 = vmatpush1.xpose.msra.mxu0 %v1549
      %1611 = vmatprep.subr.mxu0 0.0
      %1612 = vmatpush1.xpose.msra.mxu0 %v1546
      %1613 = vmatprep.subr.mxu0 0.0
      %1614 = vmatpush1.xpose.msra.mxu0 %v1543
      %1615 = vmatprep.subr.mxu0 0.0
      %1616 = vmatpush1.xpose.msra.mxu0 %v1540
      %1617 = vmatprep.subr.mxu0 0.0
      %1618 = vmatpush1.xpose.msra.mxu0 %v1537
      %1619 = vmatprep.subr.mxu0 0.0
      %1620 = vmatpush1.xpose.msra.mxu0 %v1534
      %1621 = vmatprep.subr.mxu0 0.0
      %1622 = vmatpush1.xpose.msra.mxu0 %v1531
      %1623 = vmatprep.subr.mxu0 0.0
      %1624 = vmatpush1.xpose.msra.mxu0 %v1528
      %1625 = vmatprep.subr.mxu0 0.0
      %1626 = vmatpush1.xpose.msra.mxu0 %v1525
      %1627 = vmatprep.subr.mxu0 0.0
      %1628 = vmatpush1.xpose.msra.mxu0 %v1522
      %1629 = vmatprep.subr.mxu0 0.0
      %1630 = vmatpush1.xpose.msra.mxu0 %v1519
      %1631 = vmatprep.subr.mxu0 0.0
      %1632 = vmatpush1.xpose.msra.mxu0 %v1516
      %1633 = vmatprep.subr.mxu0 0.0
      %1634 = vmatpush1.xpose.msra.mxu0 %v1513
      %1635 = vmatprep.subr.mxu0 0.0
      %1636 = vmatpush1.xpose.msra.mxu0 %v1510
      %1637 = vmatprep.subr.mxu0 0.0
      %1638 = vmatpush2.xpose.msra.mxu0 %v1603
      %1639 = vmatprep.subr.mxu0 0.0
      %1640 = vmatpush2.xpose.msra.mxu0 %v1600
      %1641 = vmatprep.subr.mxu0 0.0
      %1642 = vmatpush2.xpose.msra.mxu0 %v1597
      %1643 = vmatprep.subr.mxu0 0.0
      %1644 = vmatpush2.xpose.msra.mxu0 %v1594
      %1645 = vmatprep.subr.mxu0 0.0
      %1646 = vmatpush2.xpose.msra.mxu0 %v1591
      %1647 = vmatprep.subr.mxu0 0.0
      %1648 = vmatpush2.xpose.msra.mxu0 %v1588
      %1649 = vmatprep.subr.mxu0 0.0
      %1650 = vmatpush2.xpose.msra.mxu0 %v1585
      %1651 = vmatprep.subr.mxu0 0.0
      %1652 = vmatpush2.xpose.msra.mxu0 %v1582
      %1653 = vmatprep.subr.mxu0 0.0
      %1654 = vmatpush2.xpose.msra.mxu0 %v1579
      %1655 = vmatprep.subr.mxu0 0.0
      %1656 = vmatpush2.xpose.msra.mxu0 %v1576
      %1657 = vmatprep.subr.mxu0 0.0
      %1658 = vmatpush2.xpose.msra.mxu0 %v1573
      %1659 = vmatprep.subr.mxu0 0.0
      %1660 = vmatpush2.xpose.msra.mxu0 %v1570
      %1661 = vmatprep.subr.mxu0 0.0
      %1662 = vmatpush2.xpose.msra.mxu0 %v1567
      %1663 = vmatprep.subr.mxu0 0.0
      %1664 = vmatpush2.xpose.msra.mxu0 %v1564
      %1665 = vmatprep.subr.mxu0 0.0
      %1666 = vmatpush2.xpose.msra.mxu0 %v1561
      %1667 = vmatprep.subr.mxu0 0.0
      %1668 = vmatpush2.xpose.msra.mxu0 %v1558
      %1669 = vmatprep.mubr.f32.mxu0 0.0
      %1670 = vmatmul.mubr.f32.gmra.mxu0 %v1507
      %v1671 = vpop.f32.mrf.mxu0
      %v1672 = vadd.f32 0.0, %v1671
      %v1673 = vpop.f32.mrf.mxu0
      %v1674 = vadd.f32 0.0, %v1673
      %1675 = vdwg.mxu0
      %v1676 = vrot.slane %v1672, 4
      %v1677 = vadd.f32 %v1672, %v1676
      %v1678 = vrot.slane %v1677, 2
      %v1679 = vadd.f32 %v1677, %v1678
      %v1680 = vrot.slane %v1679, 1
      %v1681 = vadd.f32 %v1679, %v1680
      %v1682 = vrot.slane %v1674, 4
      %v1683 = vadd.f32 %v1674, %v1682
      %v1684 = vrot.slane %v1683, 2
      %v1685 = vadd.f32 %v1683, %v1684
      %v1686 = vrot.slane %v1685, 1
      %v1687 = vadd.f32 %v1685, %v1686
      %v1688 = vld [vmem:[#allocation2] sm:$0x1]
      %1690 = vset.pattern.permute.xlu0 0
      %1691 = vperm.xlu0 %1690, %v1688
      %v1692 = vpop.permute.xlu0 %1691
      %v1694 = vlaneseq
      %v1695 = vshrl.u32 %v1694, 7
      %v1696 = vsub.s32 0, %v1695
      %v1697 = vrot.slane %v1692, %v1696
      %v1698 = vadd.f32 %v1681, %v1697
      %v1699 = vadd.f32 %v1687, %v1697
      %v1702 = vcombine.low %v1698, %v1699
      %v1704 = vunpack.c.l.s4 1966171168
      %v1705 = vunpack.c.0.s8 %v1704
      %v1706 = vlaneseq
      %v1707 = vshrl.u32 %v1706, 7
      %v1708 = vsub.s32 %v1705, %v1707
      %v1709 = vrot.slane %v1702, %v1708
      %v1711 = vunpack.c.l.s4 1966171168
      %v1712 = vunpack.c.0.s8 %v1711
      %v1713 = vlaneseq
      %v1714 = vshrl.u32 %v1713, 7
      %v1715 = vsub.s32 %v1712, %v1714
      %v1716 = vrot.slane %v1709, %v1715
      %v1718 = vlaneseq
      %vm1719 = vcmp.ge.s32.totalorder %v1718, 0
      %vm1720 = vcmp.lt.s32.totalorder %v1718, 256
      %vm1721 = vmand %vm1719, %vm1720
      %1722 = vst.msk [vmem:[%s356] sm:$0x3] %vm1721, %v1716
      %s1723 = smul.u32 2, %s22
      %p1724 = scmp.lt.s32.totalorder %s1723, 3
      %s1725 = scalar_select %p1724, %s1723, 3
      %s1726 = scalar_lea.vmem %s9, %s1725
      // Predicated region
      $region57: #{qvalue_net_continuous.1} parent=55 // pred_check
        %p1727 = pneg %p239
      $region58: #{qvalue_net_continuous.1} parent=55 // pred_check_branch
        %1729 = sbr.rel (%p1727) target = $region60
      $region59: #{qvalue_net_continuous.1} parent=55 // pred_region
        %s1730 = smul.u32 2, %s22
      $region60: #{qvalue_net_continuous.1} parent=55 // pred_fallthru
        _
    $region56: #{qvalue_net_continuous.1} parent=5 // pred_fallthru
      _
    %p1731 = scmp.le.s32.totalorder 2, %s17
    // Predicated region
    $region61: #{qvalue_net_continuous.1} parent=5 // pred_check
      %p1732 = pneg %p1731
    $region62: #{qvalue_net_continuous.1} parent=5 // pred_check_branch
      %1734 = sbr.rel (%p1732) target = $region64
    $region63: #{qvalue_net_continuous.1} parent=5 // pred_region
      %s1735 = ssub.s32 %s17, 2
      // Predicated region
      $region65: #{qvalue_net_continuous.1} parent=63 // pred_check
        %p1736 = pneg %p245
      $region66: #{qvalue_net_continuous.1} parent=63 // pred_check_branch
        %1738 = sbr.rel (%p1736) target = $region68
      $region67: #{qvalue_net_continuous.1} parent=63 // pred_region
        %s1739 = smul.u32 2, %s23
        %p1740 = scmp.lt.s32.totalorder %s1739, 3
        %s1741 = scalar_select %p1740, %s1739, 3
        %s1742 = scalar_lea.vmem %s9, %s1741
      $region68: #{qvalue_net_continuous.1} parent=63 // pred_fallthru
        _
    $region64: #{qvalue_net_continuous.1} parent=5 // pred_fallthru
      _
  $region6: #{qvalue_net_continuous.1} parent=0 // loop_footer
    %s21 = sadd.s32 1, %s17
  $region7: #{qvalue_net_continuous.1} parent=0 // loop_footer_branch
    %16 = sbr.rel target = $region3
  $region8: #{qvalue_net_continuous.1} parent=0 // loop_exit
    _

</llo_original>
